<compile_context>
chip_gen: v5e
topology: v5e:2x2
jax: 0.10.0
libtpu: 0.0.40
codegen_flags: <defaults>
</compile_context>

<pallas_src>
import jax
import jax.numpy as jnp
from jax.experimental import pallas as pl
from jax.experimental.pallas import tpu as pltpu

LRELU_SLOPE = 0.1     # LeakyReLU negative slope
LN_EPS = 1e-5         # nn.LayerNorm default eps
SCAN_CHUNK = 8        # time-steps per selective-scan chunk (one f32 sublane group)


# ----------------------------- in-kernel helpers -----------------------------

def _silu(x):
    return x * (1.0 / (1.0 + jnp.exp(-x)))


def _softplus(x):
    return jnp.maximum(x, 0.0) + jnp.log(1.0 + jnp.exp(-jnp.abs(x)))


def _layernorm_rows(x, gamma_row, beta_row):
    # x: (L, C); LayerNorm over the channel (lane) axis per time step.
    mu = jnp.mean(x, axis=1, keepdims=True)
    var = jnp.mean((x - mu) ** 2, axis=1, keepdims=True)
    return (x - mu) * jax.lax.rsqrt(var + LN_EPS) * gamma_row + beta_row


def _conv_ln_lrelu(x_t, w_ref, b_row, g_row, be_row):
    # Right-pad-(K-1) "valid" Conv1d as K full (L,C)@(C,Cout) matmuls whose
    # outputs are shifted up by k and zero-filled at the bottom.
    # No im2col scratch; x is cast to bf16 exactly once.
    K = w_ref.shape[0]
    Cout = w_ref.shape[2]
    xb = x_t.astype(jnp.bfloat16)
    acc = jnp.dot(xb, w_ref[0], preferred_element_type=jnp.float32)
    for k in range(1, K):                                    # K static -> unrolled
        pk = jnp.dot(xb, w_ref[k], preferred_element_type=jnp.float32)
        acc = acc + jnp.concatenate(
            [pk[k:, :], jnp.zeros((k, Cout), jnp.float32)], axis=0)
    y = _layernorm_rows(acc + b_row, g_row, be_row)
    return jnp.where(y >= 0, y, LRELU_SLOPE * y)


# --------------------------------- kernels -----------------------------------

def _conv_pool_kernel(x_ref, w1_ref, b1_ref, g1_ref, be1_ref,
                      w2_ref, b2_ref, g2_ref, be2_ref, o_ref, s_sc):
    # Fused: h1 = LReLU(LN(conv1(pad(x)))); s = h1 + LReLU(LN(conv2(pad(h1))));
    #        out = AvgPool1d(s, 2, 2)   (all in one kernel, one HBM write)
    x_t = x_ref[0]                                           # (L, Cin) f32
    h1 = _conv_ln_lrelu(x_t, w1_ref, b1_ref[...], g1_ref[...], be1_ref[...])
    h2 = _conv_ln_lrelu(h1, w2_ref, b2_ref[...], g2_ref[...], be2_ref[...])
    s_sc[...] = h1 + h2                                      # (L, Cout)
    Lp = o_ref.shape[1]
    even = s_sc[pl.ds(0, Lp, stride=2), :]                   # rows 0,2,4,...
    odd = s_sc[pl.ds(1, Lp, stride=2), :]                    # rows 1,3,5,...
    o_ref[0] = 0.5 * (even + odd)


def _mamba_stack_kernel(x_ref, lng_ref, lnb_ref, inx_ref, inz_ref, cw_ref,
                        cb_ref, wdt_ref, dtb_ref, wbc_ref, at_ref, dD_ref,
                        ow_ref, o_ref,
                        xt_ref, dt_sc, dtu_sc, bc_sc, y_sc):
    # One grid step == one Mamba layer of: x = x + mamba(LN(x)), time-major.
    layer = pl.program_id(1)
    n_layers = pl.num_programs(1)

    Lh, d_model = xt_ref.shape
    d_conv = cw_ref.shape[1]
    d_inner = dD_ref.shape[2]
    d_state = at_ref.shape[1]

    @pl.when(layer == 0)
    def _():
        xt_ref[...] = x_ref[0]                               # load residual stream

    x_t = xt_ref[...]                                        # (Lh, d_model) f32

    # ChannelLayerNorm (over channels per time step)
    xn = _layernorm_rows(x_t, lng_ref[0], lnb_ref[0])
    xnb = xn.astype(jnp.bfloat16)

    # in_proj split into x-half / z-half (lane-dense outputs, no lane slicing)
    xpart = jnp.dot(xnb, inx_ref[0], preferred_element_type=jnp.float32)
    z = jnp.dot(xnb, inz_ref[0], preferred_element_type=jnp.float32)

    # Causal depthwise conv1d: in-register shifted taps (no pad scratch).
    # out[l] = sum_k w[k] * xpart[l + k - (d_conv-1)],  xpart[<0] = 0
    cw = cw_ref[0]                                           # (d_conv, d_inner) f32
    acc = cw[d_conv - 1:d_conv, :] * xpart
    for s in range(1, d_conv):                               # d_conv static -> unrolled
        shifted = jnp.concatenate(
            [jnp.zeros((s, d_inner), jnp.float32), xpart[:Lh - s, :]], axis=0)
        acc = acc + cw[d_conv - 1 - s:d_conv - s, :] * shifted
    u = _silu(acc + cb_ref[0])                               # (Lh, d_inner)
    ub = u.astype(jnp.bfloat16)

    # dt (dt_proj folded into x_proj at init) and B/C projections
    dt = _softplus(jnp.dot(ub, wdt_ref[0], preferred_element_type=jnp.float32)
                   + dtb_ref[0])                             # (Lh, d_inner) f32
    dt_sc[...] = dt
    dtu_sc[...] = dt * u
    bc_sc[...] = jnp.dot(ub, wbc_ref[0],
                         preferred_element_type=jnp.float32)  # (Lh, 2*d_state)

    A_t = at_ref[0]                                          # (d_state, d_inner), = -exp(A_log)

    # Selection matrices: extract B/C columns per chunk with two tiny MXU dots.
    rr = jax.lax.broadcasted_iota(jnp.int32, (d_state, 2 * d_state), 0)
    cc = jax.lax.broadcasted_iota(jnp.int32, (d_state, 2 * d_state), 1)
    sel_b = (cc == rr).astype(jnp.float32)
    sel_c = (cc == rr + d_state).astype(jnp.float32)

    T = SCAN_CHUNK
    n_chunks = Lh // T

    def chunk_body(ci, h):                                   # h: (d_state, d_inner)
        base = pl.multiple_of(ci * T, T)
        dt_c = dt_sc[pl.ds(base, T), :]                      # (T, d_inner) aligned loads
        dtu_c = dtu_sc[pl.ds(base, T), :]
        bc_c = bc_sc[pl.ds(base, T), :]                      # (T, 2*d_state)
        # (d_state, T) column views of B / C for the T steps of this chunk
        b_cols = jax.lax.dot_general(sel_b, bc_c, (((1,), (1,)), ((), ())),
                                     preferred_element_type=jnp.float32)
        c_cols = jax.lax.dot_general(sel_c, bc_c, (((1,), (1,)), ((), ())),
                                     preferred_element_type=jnp.float32)
        rows = []
        for t in range(T):                                   # unrolled recurrence
            dA = jnp.exp(dt_c[t:t + 1, :] * A_t)             # (d_state, d_inner)
            h = dA * h + b_cols[:, t:t + 1] * dtu_c[t:t + 1, :]
            rows.append(jnp.sum(h * c_cols[:, t:t + 1], axis=0, keepdims=True))
        y_sc[pl.ds(base, T), :] = jnp.concatenate(rows, axis=0)
        return h

    _ = jax.lax.fori_loop(0, n_chunks, chunk_body,
                          jnp.zeros((d_state, d_inner), jnp.float32))

    y = y_sc[...] + u * dD_ref[0]                            # skip term D*u
    y = y * _silu(z)                                         # gate
    out = jnp.dot(y.astype(jnp.bfloat16), ow_ref[0],
                  preferred_element_type=jnp.float32)        # (Lh, d_model)

    new_x = x_t + out                                        # residual
    xt_ref[...] = new_x

    @pl.when(layer == n_layers - 1)
    def _():
        o_ref[0] = new_x


# --------------------------- pallas_call wrappers -----------------------------

def _fixed_spec(shape):
    zeros = (0,) * len(shape)
    return pl.BlockSpec(shape, lambda i: zeros)


def conv_stage_call(x_t, p):
    B, L, Cin = x_t.shape
    K = p['w1'].shape[0]
    Cout = p['w1'].shape[2]
    Lp = L // 2                                              # AvgPool1d(2,2) drops trailing
    return pl.pallas_call(
        _conv_pool_kernel,
        out_shape=jax.ShapeDtypeStruct((B, Lp, Cout), jnp.float32),
        grid=(B,),
        in_specs=[
            pl.BlockSpec((1, L, Cin), lambda i: (i, 0, 0)),
            _fixed_spec(p['w1'].shape), _fixed_spec(p['b1'].shape),
            _fixed_spec(p['g1'].shape), _fixed_spec(p['be1'].shape),
            _fixed_spec(p['w2'].shape), _fixed_spec(p['b2'].shape),
            _fixed_spec(p['g2'].shape), _fixed_spec(p['be2'].shape),
        ],
        out_specs=pl.BlockSpec((1, Lp, Cout), lambda i: (i, 0, 0)),
        scratch_shapes=[pltpu.VMEM((L, Cout), jnp.float32)],  # residual sum for pooling
        compiler_params=pltpu.CompilerParams(
            dimension_semantics=("parallel",),
            vmem_limit_bytes=64 * 1024 * 1024),
    )(x_t, p['w1'], p['b1'], p['g1'], p['be1'],
      p['w2'], p['b2'], p['g2'], p['be2'])


def mamba_stage_call(h, p):
    B, Lh, C = h.shape
    nm = p['ln_g'].shape[0]
    d_inner = p['D'].shape[2]
    d_state = p['A_t'].shape[1]
    assert Lh % SCAN_CHUNK == 0, "selective-scan chunking needs Lh % 8 == 0"

    layer_args = [p['ln_g'], p['ln_b'], p['in_w_x'], p['in_w_z'], p['conv_w'],
                  p['conv_b'], p['dt_w_eff'], p['dt_b'], p['bc_w'], p['A_t'],
                  p['D'], p['out_w']]
    layer_idx = lambda b, l: (l, 0, 0)
    batch_idx = lambda b, l: (b, 0, 0)

    in_specs = [pl.BlockSpec((1, Lh, C), batch_idx)] + \
               [pl.BlockSpec((1,) + a.shape[1:], layer_idx) for a in layer_args]

    return pl.pallas_call(
        _mamba_stack_kernel,
        out_shape=jax.ShapeDtypeStruct((B, Lh, C), jnp.float32),
        grid=(B, nm),
        in_specs=in_specs,
        out_specs=pl.BlockSpec((1, Lh, C), batch_idx),
        scratch_shapes=[
            pltpu.VMEM((Lh, C), jnp.float32),                # resident activation
            pltpu.VMEM((Lh, d_inner), jnp.float32),          # dt
            pltpu.VMEM((Lh, d_inner), jnp.float32),          # dt*u
            pltpu.VMEM((Lh, 2 * d_state), jnp.float32),      # B | C
            pltpu.VMEM((Lh, d_inner), jnp.float32),          # y
        ],
        compiler_params=pltpu.CompilerParams(
            dimension_semantics=("parallel", "arbitrary"),
            vmem_limit_bytes=64 * 1024 * 1024),
    )(h, *layer_args)


# ------------------------------ model wrapper ---------------------------------

def conv_block_forward(x, params):
    # x: (B, Cin, L) channel-major (PyTorch layout) -> time-major for the kernels
    x_t = jnp.transpose(x, (0, 2, 1))                        # (B, L, Cin)
    h = conv_stage_call(x_t, params)                         # conv+LN+LReLU+res+pool fused
    h = mamba_stage_call(h, params)                          # (B, L//2, Cout)
    return jnp.transpose(h, (0, 2, 1))                       # (B, Cout, L//2)


def init_params(key, in_channels, out_channels, kernel_size, num_mambas,
                d_state, d_conv, expand):
    d_model = out_channels
    d_inner = expand * d_model
    dt_rank = max(1, -(-d_model // 16))                      # ceil(d_model / 16)

    def nrm(k, shape, s=0.1):
        return s * jax.random.normal(k, shape, jnp.float32)

    ks = jax.random.split(key, 17)

    # Mamba in_proj (no bias), split into x / z halves (lane-dense matmuls)
    in_w = nrm(ks[10], (num_mambas, d_model, 2 * d_inner), 0.2)
    # x_proj + dt_proj generated then folded (inference-only reparam):
    #   dt = softplus(u @ (x_proj[:, :dt_rank] @ dt_proj_w) + dt_proj_b)
    x_proj_w = nrm(ks[13], (num_mambas, d_inner, dt_rank + 2 * d_state), 0.2)
    dt_w = nrm(ks[14], (num_mambas, dt_rank, d_inner), 0.3)
    dt_w_eff = jnp.einsum('nir,nrj->nij', x_proj_w[:, :, :dt_rank], dt_w)
    bc_w = x_proj_w[:, :, dt_rank:]
    # A = -exp(A_log), pre-exponentiated (inference reparam), state-major layout
    a_t = -jnp.broadcast_to(
        jnp.arange(1, d_state + 1, dtype=jnp.float32)[None, :, None],
        (num_mambas, d_state, d_inner))

    p = {
        # conv stage (effective weight-normed weights), per-tap layout (K, Cin, Cout)
        'w1': nrm(ks[0], (kernel_size, in_channels, out_channels), 0.3
                  ).astype(jnp.bfloat16),
        'b1': nrm(ks[1], (1, out_channels)),
        'g1': 1.0 + nrm(ks[2], (1, out_channels)),
        'be1': nrm(ks[3], (1, out_channels)),
        'w2': nrm(ks[4], (kernel_size, out_channels, out_channels), 0.3
                  ).astype(jnp.bfloat16),
        'b2': nrm(ks[5], (1, out_channels)),
        'g2': 1.0 + nrm(ks[6], (1, out_channels)),
        'be2': nrm(ks[7], (1, out_channels)),
        # Mamba layers, stacked over the leading (layer) axis
        'ln_g': 1.0 + nrm(ks[8], (num_mambas, 1, d_model)),
        'ln_b': nrm(ks[9], (num_mambas, 1, d_model)),
        'in_w_x': in_w[:, :, :d_inner].astype(jnp.bfloat16),
        'in_w_z': in_w[:, :, d_inner:].astype(jnp.bfloat16),
        'conv_w': nrm(ks[11], (num_mambas, d_conv, d_inner), 0.3),
        'conv_b': nrm(ks[12], (num_mambas, 1, d_inner)),
        'dt_w_eff': dt_w_eff.astype(jnp.bfloat16),           # (nm, d_inner, d_inner)
        'dt_b': nrm(ks[15], (num_mambas, 1, d_inner)),
        'bc_w': bc_w.astype(jnp.bfloat16),                   # (nm, d_inner, 2*d_state)
        'A_t': a_t,                                          # (nm, d_state, d_inner)
        'D': jnp.ones((num_mambas, 1, d_inner), jnp.float32),
        'out_w': nrm(ks[16], (num_mambas, d_inner, d_model), 0.2
                     ).astype(jnp.bfloat16),
    }
    return p


if __name__ == "__main__":
    key = jax.random.PRNGKey(0)
    B, C_in, L = 2, 4, 16
    C_out, K, num_mambas = 8, 3, 2
    d_state, d_conv, expand = 8, 3, 2                        # cfg.mamba

    kp, kx = jax.random.split(key)
    params = init_params(kp, C_in, C_out, K, num_mambas, d_state, d_conv, expand)
    x = jax.random.normal(kx, (B, C_in, L), jnp.float32)

    fwd = jax.jit(conv_block_forward)
    out = fwd(x, params)
    jax.block_until_ready(out)
    assert out.shape == (B, C_out, L // 2), out.shape
    assert bool(jnp.all(jnp.isfinite(out)))
    print("KERNEL_OK")
</pallas_src>

<mosaic_0001>
module attributes {stable_mosaic.version = 11 : i64} {
  func.func @_conv_pool_kernel(%arg0: i32, %arg1: memref<1x16x4xf32, #tpu.memory_space<vmem>>, %arg2: memref<3x4x8xbf16, #tpu.memory_space<vmem>>, %arg3: memref<1x8xf32, #tpu.memory_space<vmem>>, %arg4: memref<1x8xf32, #tpu.memory_space<vmem>>, %arg5: memref<1x8xf32, #tpu.memory_space<vmem>>, %arg6: memref<3x8x8xbf16, #tpu.memory_space<vmem>>, %arg7: memref<1x8xf32, #tpu.memory_space<vmem>>, %arg8: memref<1x8xf32, #tpu.memory_space<vmem>>, %arg9: memref<1x8xf32, #tpu.memory_space<vmem>>, %arg10: memref<1x8x8xf32, #tpu.memory_space<vmem>>, %arg11: memref<16x8xf32, #tpu.memory_space<vmem>>) attributes {dimension_semantics = [#tpu.dimension_semantics<parallel>], iteration_bounds = array<i64: 2>, scalar_prefetch = 0 : i64, scratch_operands = 1 : i64, tpu.core_type = #tpu.core_type<tc>, window_params = [{transform_indices = @transform_0, window_bounds = array<i64: 1, 16, 4>}, {pipeline_mode = #tpu.pipeline_mode<synchronous>, transform_indices = @transform_1, window_bounds = array<i64: 3, 4, 8>}, {pipeline_mode = #tpu.pipeline_mode<synchronous>, transform_indices = @transform_2, window_bounds = array<i64: 1, 8>}, {pipeline_mode = #tpu.pipeline_mode<synchronous>, transform_indices = @transform_3, window_bounds = array<i64: 1, 8>}, {pipeline_mode = #tpu.pipeline_mode<synchronous>, transform_indices = @transform_4, window_bounds = array<i64: 1, 8>}, {pipeline_mode = #tpu.pipeline_mode<synchronous>, transform_indices = @transform_5, window_bounds = array<i64: 3, 8, 8>}, {pipeline_mode = #tpu.pipeline_mode<synchronous>, transform_indices = @transform_6, window_bounds = array<i64: 1, 8>}, {pipeline_mode = #tpu.pipeline_mode<synchronous>, transform_indices = @transform_7, window_bounds = array<i64: 1, 8>}, {pipeline_mode = #tpu.pipeline_mode<synchronous>, transform_indices = @transform_8, window_bounds = array<i64: 1, 8>}, {transform_indices = @transform_9, window_bounds = array<i64: 1, 8, 8>}]} {
    %c0 = arith.constant 0 : index
    %c0_0 = arith.constant 0 : index
    %c0_1 = arith.constant 0 : index
    %0 = vector.load %arg1[%c0, %c0_0, %c0_1] : memref<1x16x4xf32, #tpu.memory_space<vmem>>, vector<1x16x4xf32>
    %1 = vector.shape_cast %0 : vector<1x16x4xf32> to vector<16x4xf32>
    %c0_2 = arith.constant 0 : index
    %c0_3 = arith.constant 0 : index
    %2 = vector.load %arg3[%c0_2, %c0_3] : memref<1x8xf32, #tpu.memory_space<vmem>>, vector<1x8xf32>
    %c0_4 = arith.constant 0 : index
    %c0_5 = arith.constant 0 : index
    %3 = vector.load %arg4[%c0_4, %c0_5] : memref<1x8xf32, #tpu.memory_space<vmem>>, vector<1x8xf32>
    %c0_6 = arith.constant 0 : index
    %c0_7 = arith.constant 0 : index
    %4 = vector.load %arg5[%c0_6, %c0_7] : memref<1x8xf32, #tpu.memory_space<vmem>>, vector<1x8xf32>
    %5 = arith.truncf %1 : vector<16x4xf32> to vector<16x4xbf16>
    %c0_8 = arith.constant 0 : index
    %c0_9 = arith.constant 0 : index
    %c0_10 = arith.constant 0 : index
    %6 = vector.load %arg2[%c0_8, %c0_9, %c0_10] : memref<3x4x8xbf16, #tpu.memory_space<vmem>>, vector<1x4x8xbf16>
    %7 = vector.shape_cast %6 : vector<1x4x8xbf16> to vector<4x8xbf16>
    %cst = arith.constant dense<0.000000e+00> : vector<16x8xf32>
    %8 = tpu.matmul %5, %7, %cst {dimension_numbers = #tpu.dot_dimension_numbers<[1], [0], [0], [1], [0, 0, 1, 1], [], []>} : vector<16x4xbf16>, vector<4x8xbf16>, vector<16x8xf32> -> vector<16x8xf32>
    %c1 = arith.constant 1 : index
    %c0_11 = arith.constant 0 : index
    %c0_12 = arith.constant 0 : index
    %9 = vector.load %arg2[%c1, %c0_11, %c0_12] : memref<3x4x8xbf16, #tpu.memory_space<vmem>>, vector<1x4x8xbf16>
    %10 = vector.shape_cast %9 : vector<1x4x8xbf16> to vector<4x8xbf16>
    %cst_13 = arith.constant dense<0.000000e+00> : vector<16x8xf32>
    %11 = tpu.matmul %5, %10, %cst_13 {dimension_numbers = #tpu.dot_dimension_numbers<[1], [0], [0], [1], [0, 0, 1, 1], [], []>} : vector<16x4xbf16>, vector<4x8xbf16>, vector<16x8xf32> -> vector<16x8xf32>
    %12 = vector.extract_strided_slice %11 {offsets = [1, 0], sizes = [15, 8], strides = [1, 1]} : vector<16x8xf32> to vector<15x8xf32>
    %cst_14 = arith.constant 0.000000e+00 : f32
    %13 = vector.broadcast %cst_14 : f32 to vector<1x8xf32>
    %14 = tpu.concatenate %12, %13 in 0 : vector<15x8xf32>, vector<1x8xf32> -> vector<16x8xf32>
    %15 = arith.addf %8, %14 : vector<16x8xf32>
    %c2 = arith.constant 2 : index
    %c0_15 = arith.constant 0 : index
    %c0_16 = arith.constant 0 : index
    %16 = vector.load %arg2[%c2, %c0_15, %c0_16] : memref<3x4x8xbf16, #tpu.memory_space<vmem>>, vector<1x4x8xbf16>
    %17 = vector.shape_cast %16 : vector<1x4x8xbf16> to vector<4x8xbf16>
    %cst_17 = arith.constant dense<0.000000e+00> : vector<16x8xf32>
    %18 = tpu.matmul %5, %17, %cst_17 {dimension_numbers = #tpu.dot_dimension_numbers<[1], [0], [0], [1], [0, 0, 1, 1], [], []>} : vector<16x4xbf16>, vector<4x8xbf16>, vector<16x8xf32> -> vector<16x8xf32>
    %19 = vector.extract_strided_slice %18 {offsets = [2, 0], sizes = [14, 8], strides = [1, 1]} : vector<16x8xf32> to vector<14x8xf32>
    %cst_18 = arith.constant 0.000000e+00 : f32
    %20 = vector.broadcast %cst_18 : f32 to vector<2x8xf32>
    %21 = tpu.concatenate %19, %20 in 0 : vector<14x8xf32>, vector<2x8xf32> -> vector<16x8xf32>
    %22 = arith.addf %15, %21 : vector<16x8xf32>
    %23 = vector.broadcast %2 : vector<1x8xf32> to vector<16x8xf32>
    %24 = arith.addf %22, %23 : vector<16x8xf32>
    %cst_19 = arith.constant dense<0.000000e+00> : vector<16xf32>
    %25 = vector.multi_reduction <add>, %24, %cst_19 [1] : vector<16x8xf32> to vector<16xf32>
    %26 = vector.shape_cast %25 : vector<16xf32> to vector<16x1xf32>
    %cst_20 = arith.constant 8.000000e+00 : f32
    %27 = vector.broadcast %cst_20 : f32 to vector<16x1xf32>
    %28 = arith.divf %26, %27 : vector<16x1xf32>
    %29 = vector.broadcast %28 : vector<16x1xf32> to vector<16x8xf32>
    %30 = arith.subf %24, %29 : vector<16x8xf32>
    %31 = arith.mulf %30, %30 : vector<16x8xf32>
    %cst_21 = arith.constant dense<0.000000e+00> : vector<16xf32>
    %32 = vector.multi_reduction <add>, %31, %cst_21 [1] : vector<16x8xf32> to vector<16xf32>
    %33 = vector.shape_cast %32 : vector<16xf32> to vector<16x1xf32>
    %cst_22 = arith.constant 8.000000e+00 : f32
    %34 = vector.broadcast %cst_22 : f32 to vector<16x1xf32>
    %35 = arith.divf %33, %34 : vector<16x1xf32>
    %36 = vector.broadcast %28 : vector<16x1xf32> to vector<16x8xf32>
    %37 = arith.subf %24, %36 : vector<16x8xf32>
    %cst_23 = arith.constant 9.99999974E-6 : f32
    %38 = vector.broadcast %cst_23 : f32 to vector<16x1xf32>
    %39 = arith.addf %35, %38 : vector<16x1xf32>
    %40 = math.rsqrt %39 : vector<16x1xf32>
    %41 = vector.broadcast %40 : vector<16x1xf32> to vector<16x8xf32>
    %42 = arith.mulf %37, %41 : vector<16x8xf32>
    %43 = vector.broadcast %3 : vector<1x8xf32> to vector<16x8xf32>
    %44 = arith.mulf %42, %43 : vector<16x8xf32>
    %45 = vector.broadcast %4 : vector<1x8xf32> to vector<16x8xf32>
    %46 = arith.addf %44, %45 : vector<16x8xf32>
    %cst_24 = arith.constant 0.000000e+00 : f32
    %47 = vector.broadcast %cst_24 : f32 to vector<16x8xf32>
    %48 = arith.cmpf oge, %46, %47 : vector<16x8xf32>
    %cst_25 = arith.constant 1.000000e-01 : f32
    %49 = vector.broadcast %cst_25 : f32 to vector<16x8xf32>
    %50 = arith.mulf %49, %46 : vector<16x8xf32>
    %51 = arith.select %48, %46, %50 : vector<16x8xi1>, vector<16x8xf32>
    %c0_26 = arith.constant 0 : index
    %c0_27 = arith.constant 0 : index
    %52 = vector.load %arg7[%c0_26, %c0_27] : memref<1x8xf32, #tpu.memory_space<vmem>>, vector<1x8xf32>
    %c0_28 = arith.constant 0 : index
    %c0_29 = arith.constant 0 : index
    %53 = vector.load %arg8[%c0_28, %c0_29] : memref<1x8xf32, #tpu.memory_space<vmem>>, vector<1x8xf32>
    %c0_30 = arith.constant 0 : index
    %c0_31 = arith.constant 0 : index
    %54 = vector.load %arg9[%c0_30, %c0_31] : memref<1x8xf32, #tpu.memory_space<vmem>>, vector<1x8xf32>
    %55 = arith.truncf %51 : vector<16x8xf32> to vector<16x8xbf16>
    %c0_32 = arith.constant 0 : index
    %c0_33 = arith.constant 0 : index
    %c0_34 = arith.constant 0 : index
    %56 = vector.load %arg6[%c0_32, %c0_33, %c0_34] : memref<3x8x8xbf16, #tpu.memory_space<vmem>>, vector<1x8x8xbf16>
    %57 = vector.shape_cast %56 : vector<1x8x8xbf16> to vector<8x8xbf16>
    %cst_35 = arith.constant dense<0.000000e+00> : vector<16x8xf32>
    %58 = tpu.matmul %55, %57, %cst_35 {dimension_numbers = #tpu.dot_dimension_numbers<[1], [0], [0], [1], [0, 0, 1, 1], [], []>} : vector<16x8xbf16>, vector<8x8xbf16>, vector<16x8xf32> -> vector<16x8xf32>
    %c1_36 = arith.constant 1 : index
    %c0_37 = arith.constant 0 : index
    %c0_38 = arith.constant 0 : index
    %59 = vector.load %arg6[%c1_36, %c0_37, %c0_38] : memref<3x8x8xbf16, #tpu.memory_space<vmem>>, vector<1x8x8xbf16>
    %60 = vector.shape_cast %59 : vector<1x8x8xbf16> to vector<8x8xbf16>
    %cst_39 = arith.constant dense<0.000000e+00> : vector<16x8xf32>
    %61 = tpu.matmul %55, %60, %cst_39 {dimension_numbers = #tpu.dot_dimension_numbers<[1], [0], [0], [1], [0, 0, 1, 1], [], []>} : vector<16x8xbf16>, vector<8x8xbf16>, vector<16x8xf32> -> vector<16x8xf32>
    %62 = vector.extract_strided_slice %61 {offsets = [1, 0], sizes = [15, 8], strides = [1, 1]} : vector<16x8xf32> to vector<15x8xf32>
    %cst_40 = arith.constant 0.000000e+00 : f32
    %63 = vector.broadcast %cst_40 : f32 to vector<1x8xf32>
    %64 = tpu.concatenate %62, %63 in 0 : vector<15x8xf32>, vector<1x8xf32> -> vector<16x8xf32>
    %65 = arith.addf %58, %64 : vector<16x8xf32>
    %c2_41 = arith.constant 2 : index
    %c0_42 = arith.constant 0 : index
    %c0_43 = arith.constant 0 : index
    %66 = vector.load %arg6[%c2_41, %c0_42, %c0_43] : memref<3x8x8xbf16, #tpu.memory_space<vmem>>, vector<1x8x8xbf16>
    %67 = vector.shape_cast %66 : vector<1x8x8xbf16> to vector<8x8xbf16>
    %cst_44 = arith.constant dense<0.000000e+00> : vector<16x8xf32>
    %68 = tpu.matmul %55, %67, %cst_44 {dimension_numbers = #tpu.dot_dimension_numbers<[1], [0], [0], [1], [0, 0, 1, 1], [], []>} : vector<16x8xbf16>, vector<8x8xbf16>, vector<16x8xf32> -> vector<16x8xf32>
    %69 = vector.extract_strided_slice %68 {offsets = [2, 0], sizes = [14, 8], strides = [1, 1]} : vector<16x8xf32> to vector<14x8xf32>
    %cst_45 = arith.constant 0.000000e+00 : f32
    %70 = vector.broadcast %cst_45 : f32 to vector<2x8xf32>
    %71 = tpu.concatenate %69, %70 in 0 : vector<14x8xf32>, vector<2x8xf32> -> vector<16x8xf32>
    %72 = arith.addf %65, %71 : vector<16x8xf32>
    %73 = vector.broadcast %52 : vector<1x8xf32> to vector<16x8xf32>
    %74 = arith.addf %72, %73 : vector<16x8xf32>
    %cst_46 = arith.constant dense<0.000000e+00> : vector<16xf32>
    %75 = vector.multi_reduction <add>, %74, %cst_46 [1] : vector<16x8xf32> to vector<16xf32>
    %76 = vector.shape_cast %75 : vector<16xf32> to vector<16x1xf32>
    %cst_47 = arith.constant 8.000000e+00 : f32
    %77 = vector.broadcast %cst_47 : f32 to vector<16x1xf32>
    %78 = arith.divf %76, %77 : vector<16x1xf32>
    %79 = vector.broadcast %78 : vector<16x1xf32> to vector<16x8xf32>
    %80 = arith.subf %74, %79 : vector<16x8xf32>
    %81 = arith.mulf %80, %80 : vector<16x8xf32>
    %cst_48 = arith.constant dense<0.000000e+00> : vector<16xf32>
    %82 = vector.multi_reduction <add>, %81, %cst_48 [1] : vector<16x8xf32> to vector<16xf32>
    %83 = vector.shape_cast %82 : vector<16xf32> to vector<16x1xf32>
    %cst_49 = arith.constant 8.000000e+00 : f32
    %84 = vector.broadcast %cst_49 : f32 to vector<16x1xf32>
    %85 = arith.divf %83, %84 : vector<16x1xf32>
    %86 = vector.broadcast %78 : vector<16x1xf32> to vector<16x8xf32>
    %87 = arith.subf %74, %86 : vector<16x8xf32>
    %cst_50 = arith.constant 9.99999974E-6 : f32
    %88 = vector.broadcast %cst_50 : f32 to vector<16x1xf32>
    %89 = arith.addf %85, %88 : vector<16x1xf32>
    %90 = math.rsqrt %89 : vector<16x1xf32>
    %91 = vector.broadcast %90 : vector<16x1xf32> to vector<16x8xf32>
    %92 = arith.mulf %87, %91 : vector<16x8xf32>
    %93 = vector.broadcast %53 : vector<1x8xf32> to vector<16x8xf32>
    %94 = arith.mulf %92, %93 : vector<16x8xf32>
    %95 = vector.broadcast %54 : vector<1x8xf32> to vector<16x8xf32>
    %96 = arith.addf %94, %95 : vector<16x8xf32>
    %cst_51 = arith.constant 0.000000e+00 : f32
    %97 = vector.broadcast %cst_51 : f32 to vector<16x8xf32>
    %98 = arith.cmpf oge, %96, %97 : vector<16x8xf32>
    %cst_52 = arith.constant 1.000000e-01 : f32
    %99 = vector.broadcast %cst_52 : f32 to vector<16x8xf32>
    %100 = arith.mulf %99, %96 : vector<16x8xf32>
    %101 = arith.select %98, %96, %100 : vector<16x8xi1>, vector<16x8xf32>
    %102 = arith.addf %51, %101 : vector<16x8xf32>
    %c0_53 = arith.constant 0 : index
    %c0_54 = arith.constant 0 : index
    %103 = vector.load %arg11[%c0_53, %c0_54] : memref<16x8xf32, #tpu.memory_space<vmem>>, vector<16x8xf32>
    tpu.vector_store %arg11[%c0_53, %c0_54], %102 {strides = array<i32>} : memref<16x8xf32, #tpu.memory_space<vmem>>, vector<16x8xf32>,
    %c0_55 = arith.constant 0 : index
    %c0_56 = arith.constant 0 : index
    %104 = tpu.strided_load %arg11[%c0_55, %c0_56] {strides = array<i32: 2, 1>} : memref<16x8xf32, #tpu.memory_space<vmem>>, vector<8x8xf32>
    %c1_57 = arith.constant 1 : index
    %c0_58 = arith.constant 0 : index
    %105 = tpu.strided_load %arg11[%c1_57, %c0_58] {strides = array<i32: 2, 1>} : memref<16x8xf32, #tpu.memory_space<vmem>>, vector<8x8xf32>
    %106 = arith.addf %104, %105 : vector<8x8xf32>
    %cst_59 = arith.constant 5.000000e-01 : f32
    %107 = vector.broadcast %cst_59 : f32 to vector<8x8xf32>
    %108 = arith.mulf %107, %106 : vector<8x8xf32>
    %c0_60 = arith.constant 0 : index
    %c0_61 = arith.constant 0 : index
    %c0_62 = arith.constant 0 : index
    %109 = vector.load %arg10[%c0_60, %c0_61, %c0_62] : memref<1x8x8xf32, #tpu.memory_space<vmem>>, vector<1x8x8xf32>
    %110 = vector.shape_cast %109 : vector<1x8x8xf32> to vector<8x8xf32>
    %111 = vector.shape_cast %108 : vector<8x8xf32> to vector<1x8x8xf32>
    tpu.vector_store %arg10[%c0_60, %c0_61, %c0_62], %111 {strides = array<i32>} : memref<1x8x8xf32, #tpu.memory_space<vmem>>, vector<1x8x8xf32>,
    return
  }
  func.func @transform_0(%arg0: i32) -> (i32, i32, i32) {
    %c0_i32 = arith.constant 0 : i32
    %c0_i32_0 = arith.constant 0 : i32
    %c0_i32_1 = arith.constant 0 : i32
    return %arg0, %c0_i32, %c0_i32_0 : i32, i32, i32
  }
  func.func @transform_1(%arg0: i32) -> (i32, i32, i32) {
    %c0_i32 = arith.constant 0 : i32
    %c0_i32_0 = arith.constant 0 : i32
    %c0_i32_1 = arith.constant 0 : i32
    %c0_i32_2 = arith.constant 0 : i32
    return %c0_i32, %c0_i32_0, %c0_i32_1 : i32, i32, i32
  }
  func.func @transform_2(%arg0: i32) -> (i32, i32) {
    %c0_i32 = arith.constant 0 : i32
    %c0_i32_0 = arith.constant 0 : i32
    %c0_i32_1 = arith.constant 0 : i32
    return %c0_i32, %c0_i32_0 : i32, i32
  }
  func.func @transform_3(%arg0: i32) -> (i32, i32) {
    %c0_i32 = arith.constant 0 : i32
    %c0_i32_0 = arith.constant 0 : i32
    %c0_i32_1 = arith.constant 0 : i32
    return %c0_i32, %c0_i32_0 : i32, i32
  }
  func.func @transform_4(%arg0: i32) -> (i32, i32) {
    %c0_i32 = arith.constant 0 : i32
    %c0_i32_0 = arith.constant 0 : i32
    %c0_i32_1 = arith.constant 0 : i32
    return %c0_i32, %c0_i32_0 : i32, i32
  }
  func.func @transform_5(%arg0: i32) -> (i32, i32, i32) {
    %c0_i32 = arith.constant 0 : i32
    %c0_i32_0 = arith.constant 0 : i32
    %c0_i32_1 = arith.constant 0 : i32
    %c0_i32_2 = arith.constant 0 : i32
    return %c0_i32, %c0_i32_0, %c0_i32_1 : i32, i32, i32
  }
  func.func @transform_6(%arg0: i32) -> (i32, i32) {
    %c0_i32 = arith.constant 0 : i32
    %c0_i32_0 = arith.constant 0 : i32
    %c0_i32_1 = arith.constant 0 : i32
    return %c0_i32, %c0_i32_0 : i32, i32
  }
  func.func @transform_7(%arg0: i32) -> (i32, i32) {
    %c0_i32 = arith.constant 0 : i32
    %c0_i32_0 = arith.constant 0 : i32
    %c0_i32_1 = arith.constant 0 : i32
    return %c0_i32, %c0_i32_0 : i32, i32
  }
  func.func @transform_8(%arg0: i32) -> (i32, i32) {
    %c0_i32 = arith.constant 0 : i32
    %c0_i32_0 = arith.constant 0 : i32
    %c0_i32_1 = arith.constant 0 : i32
    return %c0_i32, %c0_i32_0 : i32, i32
  }
  func.func @transform_9(%arg0: i32) -> (i32, i32, i32) {
    %c0_i32 = arith.constant 0 : i32
    %c0_i32_0 = arith.constant 0 : i32
    %c0_i32_1 = arith.constant 0 : i32
    return %arg0, %c0_i32, %c0_i32_0 : i32, i32, i32
  }
}

module attributes {stable_mosaic.version = 11 : i64} {
  func.func @_mamba_stack_kernel(%arg0: i32, %arg1: i32, %arg2: memref<1x8x8xf32, #tpu.memory_space<vmem>>, %arg3: memref<1x1x8xf32, #tpu.memory_space<vmem>>, %arg4: memref<1x1x8xf32, #tpu.memory_space<vmem>>, %arg5: memref<1x8x16xbf16, #tpu.memory_space<vmem>>, %arg6: memref<1x8x16xbf16, #tpu.memory_space<vmem>>, %arg7: memref<1x3x16xf32, #tpu.memory_space<vmem>>, %arg8: memref<1x1x16xf32, #tpu.memory_space<vmem>>, %arg9: memref<1x16x16xbf16, #tpu.memory_space<vmem>>, %arg10: memref<1x1x16xf32, #tpu.memory_space<vmem>>, %arg11: memref<1x16x16xbf16, #tpu.memory_space<vmem>>, %arg12: memref<1x8x16xf32, #tpu.memory_space<vmem>>, %arg13: memref<1x1x16xf32, #tpu.memory_space<vmem>>, %arg14: memref<1x16x8xbf16, #tpu.memory_space<vmem>>, %arg15: memref<1x8x8xf32, #tpu.memory_space<vmem>>, %arg16: memref<8x8xf32, #tpu.memory_space<vmem>>, %arg17: memref<8x16xf32, #tpu.memory_space<vmem>>, %arg18: memref<8x16xf32, #tpu.memory_space<vmem>>, %arg19: memref<8x16xf32, #tpu.memory_space<vmem>>, %arg20: memref<8x16xf32, #tpu.memory_space<vmem>>) attributes {dimension_semantics = [#tpu.dimension_semantics<parallel>, #tpu.dimension_semantics<arbitrary>], iteration_bounds = array<i64: 2, 2>, scalar_prefetch = 0 : i64, scratch_operands = 5 : i64, tpu.core_type = #tpu.core_type<tc>, window_params = [{transform_indices = @transform_0, window_bounds = array<i64: 1, 8, 8>}, {transform_indices = @transform_1, window_bounds = array<i64: 1, 1, 8>}, {transform_indices = @transform_2, window_bounds = array<i64: 1, 1, 8>}, {transform_indices = @transform_3, window_bounds = array<i64: 1, 8, 16>}, {transform_indices = @transform_4, window_bounds = array<i64: 1, 8, 16>}, {transform_indices = @transform_5, window_bounds = array<i64: 1, 3, 16>}, {transform_indices = @transform_6, window_bounds = array<i64: 1, 1, 16>}, {transform_indices = @transform_7, window_bounds = array<i64: 1, 16, 16>}, {transform_indices = @transform_8, window_bounds = array<i64: 1, 1, 16>}, {transform_indices = @transform_9, window_bounds = array<i64: 1, 16, 16>}, {transform_indices = @transform_10, window_bounds = array<i64: 1, 8, 16>}, {transform_indices = @transform_11, window_bounds = array<i64: 1, 1, 16>}, {transform_indices = @transform_12, window_bounds = array<i64: 1, 16, 8>}, {transform_indices = @transform_13, window_bounds = array<i64: 1, 8, 8>}]} {
    %c0_i32 = arith.constant 0 : i32
    %0 = arith.cmpi eq, %arg1, %c0_i32 : i32
    %1 = arith.extui %0 : i1 to i32
    %c0_i32_0 = arith.constant 0 : i32
    %2 = arith.cmpi ne, %1, %c0_i32_0 : i32
    scf.if %2 {
      %c0_87 = arith.constant 0 : index
      %c0_88 = arith.constant 0 : index
      %c0_89 = arith.constant 0 : index
      %271 = vector.load %arg2[%c0_87, %c0_88, %c0_89] : memref<1x8x8xf32, #tpu.memory_space<vmem>>, vector<1x8x8xf32>
      %272 = vector.shape_cast %271 : vector<1x8x8xf32> to vector<8x8xf32>
      %c0_90 = arith.constant 0 : index
      %c0_91 = arith.constant 0 : index
      %273 = vector.load %arg16[%c0_90, %c0_91] : memref<8x8xf32, #tpu.memory_space<vmem>>, vector<8x8xf32>
      tpu.vector_store %arg16[%c0_90, %c0_91], %272 {strides = array<i32>} : memref<8x8xf32, #tpu.memory_space<vmem>>, vector<8x8xf32>,
    } else {
    }
    %c0 = arith.constant 0 : index
    %c0_1 = arith.constant 0 : index
    %3 = vector.load %arg16[%c0, %c0_1] : memref<8x8xf32, #tpu.memory_space<vmem>>, vector<8x8xf32>
    %c0_2 = arith.constant 0 : index
    %c0_3 = arith.constant 0 : index
    %c0_4 = arith.constant 0 : index
    %4 = vector.load %arg3[%c0_2, %c0_3, %c0_4] : memref<1x1x8xf32, #tpu.memory_space<vmem>>, vector<1x1x8xf32>
    %5 = vector.shape_cast %4 : vector<1x1x8xf32> to vector<1x8xf32>
    %c0_5 = arith.constant 0 : index
    %c0_6 = arith.constant 0 : index
    %c0_7 = arith.constant 0 : index
    %6 = vector.load %arg4[%c0_5, %c0_6, %c0_7] : memref<1x1x8xf32, #tpu.memory_space<vmem>>, vector<1x1x8xf32>
    %7 = vector.shape_cast %6 : vector<1x1x8xf32> to vector<1x8xf32>
    %cst = arith.constant dense<0.000000e+00> : vector<8xf32>
    %8 = vector.multi_reduction <add>, %3, %cst [1] : vector<8x8xf32> to vector<8xf32>
    %9 = vector.shape_cast %8 : vector<8xf32> to vector<8x1xf32>
    %cst_8 = arith.constant 8.000000e+00 : f32
    %10 = vector.broadcast %cst_8 : f32 to vector<8x1xf32>
    %11 = arith.divf %9, %10 : vector<8x1xf32>
    %12 = vector.broadcast %11 : vector<8x1xf32> to vector<8x8xf32>
    %13 = arith.subf %3, %12 : vector<8x8xf32>
    %14 = arith.mulf %13, %13 : vector<8x8xf32>
    %cst_9 = arith.constant dense<0.000000e+00> : vector<8xf32>
    %15 = vector.multi_reduction <add>, %14, %cst_9 [1] : vector<8x8xf32> to vector<8xf32>
    %16 = vector.shape_cast %15 : vector<8xf32> to vector<8x1xf32>
    %cst_10 = arith.constant 8.000000e+00 : f32
    %17 = vector.broadcast %cst_10 : f32 to vector<8x1xf32>
    %18 = arith.divf %16, %17 : vector<8x1xf32>
    %19 = vector.broadcast %11 : vector<8x1xf32> to vector<8x8xf32>
    %20 = arith.subf %3, %19 : vector<8x8xf32>
    %cst_11 = arith.constant 9.99999974E-6 : f32
    %21 = vector.broadcast %cst_11 : f32 to vector<8x1xf32>
    %22 = arith.addf %18, %21 : vector<8x1xf32>
    %23 = math.rsqrt %22 : vector<8x1xf32>
    %24 = vector.broadcast %23 : vector<8x1xf32> to vector<8x8xf32>
    %25 = arith.mulf %20, %24 : vector<8x8xf32>
    %26 = vector.broadcast %5 : vector<1x8xf32> to vector<8x8xf32>
    %27 = arith.mulf %25, %26 : vector<8x8xf32>
    %28 = vector.broadcast %7 : vector<1x8xf32> to vector<8x8xf32>
    %29 = arith.addf %27, %28 : vector<8x8xf32>
    %30 = arith.truncf %29 : vector<8x8xf32> to vector<8x8xbf16>
    %c0_12 = arith.constant 0 : index
    %c0_13 = arith.constant 0 : index
    %c0_14 = arith.constant 0 : index
    %31 = vector.load %arg5[%c0_12, %c0_13, %c0_14] : memref<1x8x16xbf16, #tpu.memory_space<vmem>>, vector<1x8x16xbf16>
    %32 = vector.shape_cast %31 : vector<1x8x16xbf16> to vector<8x16xbf16>
    %cst_15 = arith.constant dense<0.000000e+00> : vector<8x16xf32>
    %33 = tpu.matmul %30, %32, %cst_15 {dimension_numbers = #tpu.dot_dimension_numbers<[1], [0], [0], [1], [0, 0, 1, 1], [], []>} : vector<8x8xbf16>, vector<8x16xbf16>, vector<8x16xf32> -> vector<8x16xf32>
    %c0_16 = arith.constant 0 : index
    %c0_17 = arith.constant 0 : index
    %c0_18 = arith.constant 0 : index
    %34 = vector.load %arg6[%c0_16, %c0_17, %c0_18] : memref<1x8x16xbf16, #tpu.memory_space<vmem>>, vector<1x8x16xbf16>
    %35 = vector.shape_cast %34 : vector<1x8x16xbf16> to vector<8x16xbf16>
    %cst_19 = arith.constant dense<0.000000e+00> : vector<8x16xf32>
    %36 = tpu.matmul %30, %35, %cst_19 {dimension_numbers = #tpu.dot_dimension_numbers<[1], [0], [0], [1], [0, 0, 1, 1], [], []>} : vector<8x8xbf16>, vector<8x16xbf16>, vector<8x16xf32> -> vector<8x16xf32>
    %c0_20 = arith.constant 0 : index
    %c0_21 = arith.constant 0 : index
    %c0_22 = arith.constant 0 : index
    %37 = vector.load %arg7[%c0_20, %c0_21, %c0_22] : memref<1x3x16xf32, #tpu.memory_space<vmem>>, vector<1x3x16xf32>
    %38 = vector.shape_cast %37 : vector<1x3x16xf32> to vector<3x16xf32>
    %39 = vector.extract_strided_slice %38 {offsets = [2, 0], sizes = [1, 16], strides = [1, 1]} : vector<3x16xf32> to vector<1x16xf32>
    %40 = vector.broadcast %39 : vector<1x16xf32> to vector<8x16xf32>
    %41 = arith.mulf %40, %33 : vector<8x16xf32>
    %cst_23 = arith.constant 0.000000e+00 : f32
    %42 = vector.broadcast %cst_23 : f32 to vector<1x16xf32>
    %43 = vector.extract_strided_slice %33 {offsets = [0, 0], sizes = [7, 16], strides = [1, 1]} : vector<8x16xf32> to vector<7x16xf32>
    %44 = tpu.concatenate %42, %43 in 0 : vector<1x16xf32>, vector<7x16xf32> -> vector<8x16xf32>
    %45 = vector.extract_strided_slice %38 {offsets = [1, 0], sizes = [1, 16], strides = [1, 1]} : vector<3x16xf32> to vector<1x16xf32>
    %46 = vector.broadcast %45 : vector<1x16xf32> to vector<8x16xf32>
    %47 = arith.mulf %46, %44 : vector<8x16xf32>
    %48 = arith.addf %41, %47 : vector<8x16xf32>
    %cst_24 = arith.constant 0.000000e+00 : f32
    %49 = vector.broadcast %cst_24 : f32 to vector<2x16xf32>
    %50 = vector.extract_strided_slice %33 {offsets = [0, 0], sizes = [6, 16], strides = [1, 1]} : vector<8x16xf32> to vector<6x16xf32>
    %51 = tpu.concatenate %49, %50 in 0 : vector<2x16xf32>, vector<6x16xf32> -> vector<8x16xf32>
    %52 = vector.extract_strided_slice %38 {offsets = [0, 0], sizes = [1, 16], strides = [1, 1]} : vector<3x16xf32> to vector<1x16xf32>
    %53 = vector.broadcast %52 : vector<1x16xf32> to vector<8x16xf32>
    %54 = arith.mulf %53, %51 : vector<8x16xf32>
    %55 = arith.addf %48, %54 : vector<8x16xf32>
    %c0_25 = arith.constant 0 : index
    %c0_26 = arith.constant 0 : index
    %c0_27 = arith.constant 0 : index
    %56 = vector.load %arg8[%c0_25, %c0_26, %c0_27] : memref<1x1x16xf32, #tpu.memory_space<vmem>>, vector<1x1x16xf32>
    %57 = vector.shape_cast %56 : vector<1x1x16xf32> to vector<1x16xf32>
    %58 = vector.broadcast %57 : vector<1x16xf32> to vector<8x16xf32>
    %59 = arith.addf %55, %58 : vector<8x16xf32>
    %cst_28 = arith.constant 0.000000e+00 : f32
    %60 = vector.broadcast %cst_28 : f32 to vector<8x16xf32>
    %61 = arith.subf %60, %59 : vector<8x16xf32>
    %62 = math.exp %61 : vector<8x16xf32>
    %cst_29 = arith.constant 1.000000e+00 : f32
    %63 = vector.broadcast %cst_29 : f32 to vector<8x16xf32>
    %64 = arith.addf %63, %62 : vector<8x16xf32>
    %cst_30 = arith.constant 1.000000e+00 : f32
    %65 = vector.broadcast %cst_30 : f32 to vector<8x16xf32>
    %66 = arith.divf %65, %64 : vector<8x16xf32>
    %67 = arith.mulf %59, %66 : vector<8x16xf32>
    %68 = arith.truncf %67 : vector<8x16xf32> to vector<8x16xbf16>
    %c0_31 = arith.constant 0 : index
    %c0_32 = arith.constant 0 : index
    %c0_33 = arith.constant 0 : index
    %69 = vector.load %arg9[%c0_31, %c0_32, %c0_33] : memref<1x16x16xbf16, #tpu.memory_space<vmem>>, vector<1x16x16xbf16>
    %70 = vector.shape_cast %69 : vector<1x16x16xbf16> to vector<16x16xbf16>
    %cst_34 = arith.constant dense<0.000000e+00> : vector<8x16xf32>
    %71 = tpu.matmul %68, %70, %cst_34 {dimension_numbers = #tpu.dot_dimension_numbers<[1], [0], [0], [1], [0, 0, 1, 1], [], []>} : vector<8x16xbf16>, vector<16x16xbf16>, vector<8x16xf32> -> vector<8x16xf32>
    %c0_35 = arith.constant 0 : index
    %c0_36 = arith.constant 0 : index
    %c0_37 = arith.constant 0 : index
    %72 = vector.load %arg10[%c0_35, %c0_36, %c0_37] : memref<1x1x16xf32, #tpu.memory_space<vmem>>, vector<1x1x16xf32>
    %73 = vector.shape_cast %72 : vector<1x1x16xf32> to vector<1x16xf32>
    %74 = vector.broadcast %73 : vector<1x16xf32> to vector<8x16xf32>
    %75 = arith.addf %71, %74 : vector<8x16xf32>
    %cst_38 = arith.constant 0.000000e+00 : f32
    %76 = vector.broadcast %cst_38 : f32 to vector<8x16xf32>
    %77 = arith.maximumf %75, %76 : vector<8x16xf32>
    %78 = math.absf %75 : vector<8x16xf32>
    %cst_39 = arith.constant 0.000000e+00 : f32
    %79 = vector.broadcast %cst_39 : f32 to vector<8x16xf32>
    %80 = arith.subf %79, %78 : vector<8x16xf32>
    %81 = math.exp %80 : vector<8x16xf32>
    %cst_40 = arith.constant 1.000000e+00 : f32
    %82 = vector.broadcast %cst_40 : f32 to vector<8x16xf32>
    %83 = arith.addf %82, %81 : vector<8x16xf32>
    %84 = math.log %83 : vector<8x16xf32>
    %85 = arith.addf %77, %84 : vector<8x16xf32>
    %c0_41 = arith.constant 0 : index
    %c0_42 = arith.constant 0 : index
    %86 = vector.load %arg17[%c0_41, %c0_42] : memref<8x16xf32, #tpu.memory_space<vmem>>, vector<8x16xf32>
    tpu.vector_store %arg17[%c0_41, %c0_42], %85 {strides = array<i32>} : memref<8x16xf32, #tpu.memory_space<vmem>>, vector<8x16xf32>,
    %87 = arith.mulf %85, %67 : vector<8x16xf32>
    %c0_43 = arith.constant 0 : index
    %c0_44 = arith.constant 0 : index
    %88 = vector.load %arg18[%c0_43, %c0_44] : memref<8x16xf32, #tpu.memory_space<vmem>>, vector<8x16xf32>
    tpu.vector_store %arg18[%c0_43, %c0_44], %87 {strides = array<i32>} : memref<8x16xf32, #tpu.memory_space<vmem>>, vector<8x16xf32>,
    %c0_45 = arith.constant 0 : index
    %c0_46 = arith.constant 0 : index
    %c0_47 = arith.constant 0 : index
    %89 = vector.load %arg11[%c0_45, %c0_46, %c0_47] : memref<1x16x16xbf16, #tpu.memory_space<vmem>>, vector<1x16x16xbf16>
    %90 = vector.shape_cast %89 : vector<1x16x16xbf16> to vector<16x16xbf16>
    %cst_48 = arith.constant dense<0.000000e+00> : vector<8x16xf32>
    %91 = tpu.matmul %68, %90, %cst_48 {dimension_numbers = #tpu.dot_dimension_numbers<[1], [0], [0], [1], [0, 0, 1, 1], [], []>} : vector<8x16xbf16>, vector<16x16xbf16>, vector<8x16xf32> -> vector<8x16xf32>
    %c0_49 = arith.constant 0 : index
    %c0_50 = arith.constant 0 : index
    %92 = vector.load %arg19[%c0_49, %c0_50] : memref<8x16xf32, #tpu.memory_space<vmem>>, vector<8x16xf32>
    tpu.vector_store %arg19[%c0_49, %c0_50], %91 {strides = array<i32>} : memref<8x16xf32, #tpu.memory_space<vmem>>, vector<8x16xf32>,
    %c0_51 = arith.constant 0 : index
    %c0_52 = arith.constant 0 : index
    %c0_53 = arith.constant 0 : index
    %93 = vector.load %arg12[%c0_51, %c0_52, %c0_53] : memref<1x8x16xf32, #tpu.memory_space<vmem>>, vector<1x8x16xf32>
    %94 = vector.shape_cast %93 : vector<1x8x16xf32> to vector<8x16xf32>
    %95 = tpu.iota {dimensions = array<i32: 0>} : vector<8x16xi32>
    %96 = tpu.iota {dimensions = array<i32: 1>} : vector<8x16xi32>
    %97 = arith.cmpi eq, %96, %95 : vector<8x16xi32>
    %98 = arith.extui %97 : vector<8x16xi1> to vector<8x16xi32>
    %99 = arith.sitofp %98 : vector<8x16xi32> to vector<8x16xf32>
    %c8_i32 = arith.constant 8 : i32
    %100 = vector.broadcast %c8_i32 : i32 to vector<8x16xi32>
    %101 = arith.addi %95, %100 : vector<8x16xi32>
    %102 = arith.cmpi eq, %96, %101 : vector<8x16xi32>
    %103 = arith.extui %102 : vector<8x16xi1> to vector<8x16xi32>
    %104 = arith.sitofp %103 : vector<8x16xi32> to vector<8x16xf32>
    %cst_54 = arith.constant 0.000000e+00 : f32
    %105 = vector.broadcast %cst_54 : f32 to vector<8x16xf32>
    %c0_i32_55 = arith.constant 0 : i32
    %c8_i32_56 = arith.constant 8 : i32
    %106 = arith.muli %c0_i32_55, %c8_i32_56 : i32
    %107 = tpu.assume_multiple %106, 8 : i32
    %108 = arith.index_cast %107 : i32 to index
    %c0_57 = arith.constant 0 : index
    %109 = vector.load %arg17[%108, %c0_57] : memref<8x16xf32, #tpu.memory_space<vmem>>, vector<8x16xf32>
    %110 = arith.index_cast %107 : i32 to index
    %c0_58 = arith.constant 0 : index
    %111 = vector.load %arg18[%110, %c0_58] : memref<8x16xf32, #tpu.memory_space<vmem>>, vector<8x16xf32>
    %112 = arith.index_cast %107 : i32 to index
    %c0_59 = arith.constant 0 : index
    %113 = vector.load %arg19[%112, %c0_59] : memref<8x16xf32, #tpu.memory_space<vmem>>, vector<8x16xf32>
    %cst_60 = arith.constant dense<0.000000e+00> : vector<8x8xf32>
    %114 = tpu.matmul %99, %113, %cst_60 {dimension_numbers = #tpu.dot_dimension_numbers<[1], [1], [0], [0], [0, 0, 1, 0], [], []>} : vector<8x16xf32>, vector<8x16xf32>, vector<8x8xf32> -> vector<8x8xf32>
    %cst_61 = arith.constant dense<0.000000e+00> : vector<8x8xf32>
    %115 = tpu.matmul %104, %113, %cst_61 {dimension_numbers = #tpu.dot_dimension_numbers<[1], [1], [0], [0], [0, 0, 1, 0], [], []>} : vector<8x16xf32>, vector<8x16xf32>, vector<8x8xf32> -> vector<8x8xf32>
    %116 = vector.extract_strided_slice %109 {offsets = [0, 0], sizes = [1, 16], strides = [1, 1]} : vector<8x16xf32> to vector<1x16xf32>
    %117 = vector.broadcast %116 : vector<1x16xf32> to vector<8x16xf32>
    %118 = arith.mulf %117, %94 : vector<8x16xf32>
    %119 = math.exp %118 : vector<8x16xf32>
    %120 = arith.mulf %119, %105 : vector<8x16xf32>
    %121 = vector.extract_strided_slice %114 {offsets = [0, 0], sizes = [8, 1], strides = [1, 1]} : vector<8x8xf32> to vector<8x1xf32>
    %122 = vector.extract_strided_slice %111 {offsets = [0, 0], sizes = [1, 16], strides = [1, 1]} : vector<8x16xf32> to vector<1x16xf32>
    %123 = vector.broadcast %121 : vector<8x1xf32> to vector<8x16xf32>
    %124 = vector.broadcast %122 : vector<1x16xf32> to vector<8x16xf32>
    %125 = arith.mulf %123, %124 : vector<8x16xf32>
    %126 = arith.addf %120, %125 : vector<8x16xf32>
    %127 = vector.extract_strided_slice %115 {offsets = [0, 0], sizes = [8, 1], strides = [1, 1]} : vector<8x8xf32> to vector<8x1xf32>
    %128 = vector.broadcast %127 : vector<8x1xf32> to vector<8x16xf32>
    %129 = arith.mulf %126, %128 : vector<8x16xf32>
    %cst_62 = arith.constant dense<0.000000e+00> : vector<16xf32>
    %130 = vector.multi_reduction <add>, %129, %cst_62 [0] : vector<8x16xf32> to vector<16xf32>
    %131 = vector.shape_cast %130 : vector<16xf32> to vector<1x16xf32>
    %132 = vector.extract_strided_slice %109 {offsets = [1, 0], sizes = [1, 16], strides = [1, 1]} : vector<8x16xf32> to vector<1x16xf32>
    %133 = vector.broadcast %132 : vector<1x16xf32> to vector<8x16xf32>
    %134 = arith.mulf %133, %94 : vector<8x16xf32>
    %135 = math.exp %134 : vector<8x16xf32>
    %136 = arith.mulf %135, %126 : vector<8x16xf32>
    %137 = vector.extract_strided_slice %114 {offsets = [0, 1], sizes = [8, 1], strides = [1, 1]} : vector<8x8xf32> to vector<8x1xf32>
    %138 = vector.extract_strided_slice %111 {offsets = [1, 0], sizes = [1, 16], strides = [1, 1]} : vector<8x16xf32> to vector<1x16xf32>
    %139 = vector.broadcast %137 : vector<8x1xf32> to vector<8x16xf32>
    %140 = vector.broadcast %138 : vector<1x16xf32> to vector<8x16xf32>
    %141 = arith.mulf %139, %140 : vector<8x16xf32>
    %142 = arith.addf %136, %141 : vector<8x16xf32>
    %143 = vector.extract_strided_slice %115 {offsets = [0, 1], sizes = [8, 1], strides = [1, 1]} : vector<8x8xf32> to vector<8x1xf32>
    %144 = vector.broadcast %143 : vector<8x1xf32> to vector<8x16xf32>
    %145 = arith.mulf %142, %144 : vector<8x16xf32>
    %cst_63 = arith.constant dense<0.000000e+00> : vector<16xf32>
    %146 = vector.multi_reduction <add>, %145, %cst_63 [0] : vector<8x16xf32> to vector<16xf32>
    %147 = vector.shape_cast %146 : vector<16xf32> to vector<1x16xf32>
    %148 = vector.extract_strided_slice %109 {offsets = [2, 0], sizes = [1, 16], strides = [1, 1]} : vector<8x16xf32> to vector<1x16xf32>
    %149 = vector.broadcast %148 : vector<1x16xf32> to vector<8x16xf32>
    %150 = arith.mulf %149, %94 : vector<8x16xf32>
    %151 = math.exp %150 : vector<8x16xf32>
    %152 = arith.mulf %151, %142 : vector<8x16xf32>
    %153 = vector.extract_strided_slice %114 {offsets = [0, 2], sizes = [8, 1], strides = [1, 1]} : vector<8x8xf32> to vector<8x1xf32>
    %154 = vector.extract_strided_slice %111 {offsets = [2, 0], sizes = [1, 16], strides = [1, 1]} : vector<8x16xf32> to vector<1x16xf32>
    %155 = vector.broadcast %153 : vector<8x1xf32> to vector<8x16xf32>
    %156 = vector.broadcast %154 : vector<1x16xf32> to vector<8x16xf32>
    %157 = arith.mulf %155, %156 : vector<8x16xf32>
    %158 = arith.addf %152, %157 : vector<8x16xf32>
    %159 = vector.extract_strided_slice %115 {offsets = [0, 2], sizes = [8, 1], strides = [1, 1]} : vector<8x8xf32> to vector<8x1xf32>
    %160 = vector.broadcast %159 : vector<8x1xf32> to vector<8x16xf32>
    %161 = arith.mulf %158, %160 : vector<8x16xf32>
    %cst_64 = arith.constant dense<0.000000e+00> : vector<16xf32>
    %162 = vector.multi_reduction <add>, %161, %cst_64 [0] : vector<8x16xf32> to vector<16xf32>
    %163 = vector.shape_cast %162 : vector<16xf32> to vector<1x16xf32>
    %164 = vector.extract_strided_slice %109 {offsets = [3, 0], sizes = [1, 16], strides = [1, 1]} : vector<8x16xf32> to vector<1x16xf32>
    %165 = vector.broadcast %164 : vector<1x16xf32> to vector<8x16xf32>
    %166 = arith.mulf %165, %94 : vector<8x16xf32>
    %167 = math.exp %166 : vector<8x16xf32>
    %168 = arith.mulf %167, %158 : vector<8x16xf32>
    %169 = vector.extract_strided_slice %114 {offsets = [0, 3], sizes = [8, 1], strides = [1, 1]} : vector<8x8xf32> to vector<8x1xf32>
    %170 = vector.extract_strided_slice %111 {offsets = [3, 0], sizes = [1, 16], strides = [1, 1]} : vector<8x16xf32> to vector<1x16xf32>
    %171 = vector.broadcast %169 : vector<8x1xf32> to vector<8x16xf32>
    %172 = vector.broadcast %170 : vector<1x16xf32> to vector<8x16xf32>
    %173 = arith.mulf %171, %172 : vector<8x16xf32>
    %174 = arith.addf %168, %173 : vector<8x16xf32>
    %175 = vector.extract_strided_slice %115 {offsets = [0, 3], sizes = [8, 1], strides = [1, 1]} : vector<8x8xf32> to vector<8x1xf32>
    %176 = vector.broadcast %175 : vector<8x1xf32> to vector<8x16xf32>
    %177 = arith.mulf %174, %176 : vector<8x16xf32>
    %cst_65 = arith.constant dense<0.000000e+00> : vector<16xf32>
    %178 = vector.multi_reduction <add>, %177, %cst_65 [0] : vector<8x16xf32> to vector<16xf32>
    %179 = vector.shape_cast %178 : vector<16xf32> to vector<1x16xf32>
    %180 = vector.extract_strided_slice %109 {offsets = [4, 0], sizes = [1, 16], strides = [1, 1]} : vector<8x16xf32> to vector<1x16xf32>
    %181 = vector.broadcast %180 : vector<1x16xf32> to vector<8x16xf32>
    %182 = arith.mulf %181, %94 : vector<8x16xf32>
    %183 = math.exp %182 : vector<8x16xf32>
    %184 = arith.mulf %183, %174 : vector<8x16xf32>
    %185 = vector.extract_strided_slice %114 {offsets = [0, 4], sizes = [8, 1], strides = [1, 1]} : vector<8x8xf32> to vector<8x1xf32>
    %186 = vector.extract_strided_slice %111 {offsets = [4, 0], sizes = [1, 16], strides = [1, 1]} : vector<8x16xf32> to vector<1x16xf32>
    %187 = vector.broadcast %185 : vector<8x1xf32> to vector<8x16xf32>
    %188 = vector.broadcast %186 : vector<1x16xf32> to vector<8x16xf32>
    %189 = arith.mulf %187, %188 : vector<8x16xf32>
    %190 = arith.addf %184, %189 : vector<8x16xf32>
    %191 = vector.extract_strided_slice %115 {offsets = [0, 4], sizes = [8, 1], strides = [1, 1]} : vector<8x8xf32> to vector<8x1xf32>
    %192 = vector.broadcast %191 : vector<8x1xf32> to vector<8x16xf32>
    %193 = arith.mulf %190, %192 : vector<8x16xf32>
    %cst_66 = arith.constant dense<0.000000e+00> : vector<16xf32>
    %194 = vector.multi_reduction <add>, %193, %cst_66 [0] : vector<8x16xf32> to vector<16xf32>
    %195 = vector.shape_cast %194 : vector<16xf32> to vector<1x16xf32>
    %196 = vector.extract_strided_slice %109 {offsets = [5, 0], sizes = [1, 16], strides = [1, 1]} : vector<8x16xf32> to vector<1x16xf32>
    %197 = vector.broadcast %196 : vector<1x16xf32> to vector<8x16xf32>
    %198 = arith.mulf %197, %94 : vector<8x16xf32>
    %199 = math.exp %198 : vector<8x16xf32>
    %200 = arith.mulf %199, %190 : vector<8x16xf32>
    %201 = vector.extract_strided_slice %114 {offsets = [0, 5], sizes = [8, 1], strides = [1, 1]} : vector<8x8xf32> to vector<8x1xf32>
    %202 = vector.extract_strided_slice %111 {offsets = [5, 0], sizes = [1, 16], strides = [1, 1]} : vector<8x16xf32> to vector<1x16xf32>
    %203 = vector.broadcast %201 : vector<8x1xf32> to vector<8x16xf32>
    %204 = vector.broadcast %202 : vector<1x16xf32> to vector<8x16xf32>
    %205 = arith.mulf %203, %204 : vector<8x16xf32>
    %206 = arith.addf %200, %205 : vector<8x16xf32>
    %207 = vector.extract_strided_slice %115 {offsets = [0, 5], sizes = [8, 1], strides = [1, 1]} : vector<8x8xf32> to vector<8x1xf32>
    %208 = vector.broadcast %207 : vector<8x1xf32> to vector<8x16xf32>
    %209 = arith.mulf %206, %208 : vector<8x16xf32>
    %cst_67 = arith.constant dense<0.000000e+00> : vector<16xf32>
    %210 = vector.multi_reduction <add>, %209, %cst_67 [0] : vector<8x16xf32> to vector<16xf32>
    %211 = vector.shape_cast %210 : vector<16xf32> to vector<1x16xf32>
    %212 = vector.extract_strided_slice %109 {offsets = [6, 0], sizes = [1, 16], strides = [1, 1]} : vector<8x16xf32> to vector<1x16xf32>
    %213 = vector.broadcast %212 : vector<1x16xf32> to vector<8x16xf32>
    %214 = arith.mulf %213, %94 : vector<8x16xf32>
    %215 = math.exp %214 : vector<8x16xf32>
    %216 = arith.mulf %215, %206 : vector<8x16xf32>
    %217 = vector.extract_strided_slice %114 {offsets = [0, 6], sizes = [8, 1], strides = [1, 1]} : vector<8x8xf32> to vector<8x1xf32>
    %218 = vector.extract_strided_slice %111 {offsets = [6, 0], sizes = [1, 16], strides = [1, 1]} : vector<8x16xf32> to vector<1x16xf32>
    %219 = vector.broadcast %217 : vector<8x1xf32> to vector<8x16xf32>
    %220 = vector.broadcast %218 : vector<1x16xf32> to vector<8x16xf32>
    %221 = arith.mulf %219, %220 : vector<8x16xf32>
    %222 = arith.addf %216, %221 : vector<8x16xf32>
    %223 = vector.extract_strided_slice %115 {offsets = [0, 6], sizes = [8, 1], strides = [1, 1]} : vector<8x8xf32> to vector<8x1xf32>
    %224 = vector.broadcast %223 : vector<8x1xf32> to vector<8x16xf32>
    %225 = arith.mulf %222, %224 : vector<8x16xf32>
    %cst_68 = arith.constant dense<0.000000e+00> : vector<16xf32>
    %226 = vector.multi_reduction <add>, %225, %cst_68 [0] : vector<8x16xf32> to vector<16xf32>
    %227 = vector.shape_cast %226 : vector<16xf32> to vector<1x16xf32>
    %228 = vector.extract_strided_slice %109 {offsets = [7, 0], sizes = [1, 16], strides = [1, 1]} : vector<8x16xf32> to vector<1x16xf32>
    %229 = vector.broadcast %228 : vector<1x16xf32> to vector<8x16xf32>
    %230 = arith.mulf %229, %94 : vector<8x16xf32>
    %231 = math.exp %230 : vector<8x16xf32>
    %232 = arith.mulf %231, %222 : vector<8x16xf32>
    %233 = vector.extract_strided_slice %114 {offsets = [0, 7], sizes = [8, 1], strides = [1, 1]} : vector<8x8xf32> to vector<8x1xf32>
    %234 = vector.extract_strided_slice %111 {offsets = [7, 0], sizes = [1, 16], strides = [1, 1]} : vector<8x16xf32> to vector<1x16xf32>
    %235 = vector.broadcast %233 : vector<8x1xf32> to vector<8x16xf32>
    %236 = vector.broadcast %234 : vector<1x16xf32> to vector<8x16xf32>
    %237 = arith.mulf %235, %236 : vector<8x16xf32>
    %238 = arith.addf %232, %237 : vector<8x16xf32>
    %239 = vector.extract_strided_slice %115 {offsets = [0, 7], sizes = [8, 1], strides = [1, 1]} : vector<8x8xf32> to vector<8x1xf32>
    %240 = vector.broadcast %239 : vector<8x1xf32> to vector<8x16xf32>
    %241 = arith.mulf %238, %240 : vector<8x16xf32>
    %cst_69 = arith.constant dense<0.000000e+00> : vector<16xf32>
    %242 = vector.multi_reduction <add>, %241, %cst_69 [0] : vector<8x16xf32> to vector<16xf32>
    %243 = vector.shape_cast %242 : vector<16xf32> to vector<1x16xf32>
    %244 = tpu.concatenate %131, %147, %163, %179, %195, %211, %227, %243 in 0 : vector<1x16xf32>, vector<1x16xf32>, vector<1x16xf32>, vector<1x16xf32>, vector<1x16xf32>, vector<1x16xf32>, vector<1x16xf32>, vector<1x16xf32> -> vector<8x16xf32>
    %245 = arith.index_cast %107 : i32 to index
    %c0_70 = arith.constant 0 : index
    %246 = vector.load %arg20[%245, %c0_70] : memref<8x16xf32, #tpu.memory_space<vmem>>, vector<8x16xf32>
    tpu.vector_store %arg20[%245, %c0_70], %244 {strides = array<i32>} : memref<8x16xf32, #tpu.memory_space<vmem>>, vector<8x16xf32>,
    %c1_i32 = arith.constant 1 : i32
    %c0_71 = arith.constant 0 : index
    %c0_72 = arith.constant 0 : index
    %247 = vector.load %arg20[%c0_71, %c0_72] : memref<8x16xf32, #tpu.memory_space<vmem>>, vector<8x16xf32>
    %c0_73 = arith.constant 0 : index
    %c0_74 = arith.constant 0 : index
    %c0_75 = arith.constant 0 : index
    %248 = vector.load %arg13[%c0_73, %c0_74, %c0_75] : memref<1x1x16xf32, #tpu.memory_space<vmem>>, vector<1x1x16xf32>
    %249 = vector.shape_cast %248 : vector<1x1x16xf32> to vector<1x16xf32>
    %250 = vector.broadcast %249 : vector<1x16xf32> to vector<8x16xf32>
    %251 = arith.mulf %67, %250 : vector<8x16xf32>
    %252 = arith.addf %247, %251 : vector<8x16xf32>
    %cst_76 = arith.constant 0.000000e+00 : f32
    %253 = vector.broadcast %cst_76 : f32 to vector<8x16xf32>
    %254 = arith.subf %253, %36 : vector<8x16xf32>
    %255 = math.exp %254 : vector<8x16xf32>
    %cst_77 = arith.constant 1.000000e+00 : f32
    %256 = vector.broadcast %cst_77 : f32 to vector<8x16xf32>
    %257 = arith.addf %256, %255 : vector<8x16xf32>
    %cst_78 = arith.constant 1.000000e+00 : f32
    %258 = vector.broadcast %cst_78 : f32 to vector<8x16xf32>
    %259 = arith.divf %258, %257 : vector<8x16xf32>
    %260 = arith.mulf %36, %259 : vector<8x16xf32>
    %261 = arith.mulf %252, %260 : vector<8x16xf32>
    %262 = arith.truncf %261 : vector<8x16xf32> to vector<8x16xbf16>
    %c0_79 = arith.constant 0 : index
    %c0_80 = arith.constant 0 : index
    %c0_81 = arith.constant 0 : index
    %263 = vector.load %arg14[%c0_79, %c0_80, %c0_81] : memref<1x16x8xbf16, #tpu.memory_space<vmem>>, vector<1x16x8xbf16>
    %264 = vector.shape_cast %263 : vector<1x16x8xbf16> to vector<16x8xbf16>
    %cst_82 = arith.constant dense<0.000000e+00> : vector<8x8xf32>
    %265 = tpu.matmul %262, %264, %cst_82 {dimension_numbers = #tpu.dot_dimension_numbers<[1], [0], [0], [1], [0, 0, 1, 1], [], []>} : vector<8x16xbf16>, vector<16x8xbf16>, vector<8x8xf32> -> vector<8x8xf32>
    %266 = arith.addf %3, %265 : vector<8x8xf32>
    %c0_83 = arith.constant 0 : index
    %c0_84 = arith.constant 0 : index
    %267 = vector.load %arg16[%c0_83, %c0_84] : memref<8x8xf32, #tpu.memory_space<vmem>>, vector<8x8xf32>
    tpu.vector_store %arg16[%c0_83, %c0_84], %266 {strides = array<i32>} : memref<8x8xf32, #tpu.memory_space<vmem>>, vector<8x8xf32>,
    %c1_i32_85 = arith.constant 1 : i32
    %268 = arith.cmpi eq, %arg1, %c1_i32_85 : i32
    %269 = arith.extui %268 : i1 to i32
    %c0_i32_86 = arith.constant 0 : i32
    %270 = arith.cmpi ne, %269, %c0_i32_86 : i32
    scf.if %270 {
      %c0_87 = arith.constant 0 : index
      %c0_88 = arith.constant 0 : index
      %c0_89 = arith.constant 0 : index
      %271 = vector.load %arg15[%c0_87, %c0_88, %c0_89] : memref<1x8x8xf32, #tpu.memory_space<vmem>>, vector<1x8x8xf32>
      %272 = vector.shape_cast %271 : vector<1x8x8xf32> to vector<8x8xf32>
      %273 = vector.shape_cast %266 : vector<8x8xf32> to vector<1x8x8xf32>
      tpu.vector_store %arg15[%c0_87, %c0_88, %c0_89], %273 {strides = array<i32>} : memref<1x8x8xf32, #tpu.memory_space<vmem>>, vector<1x8x8xf32>,
    } else {
    }
    return
  }
  func.func @transform_0(%arg0: i32, %arg1: i32) -> (i32, i32, i32) {
    %c0_i32 = arith.constant 0 : i32
    %c0_i32_0 = arith.constant 0 : i32
    %c0_i32_1 = arith.constant 0 : i32
    return %arg0, %c0_i32, %c0_i32_0 : i32, i32, i32
  }
  func.func @transform_1(%arg0: i32, %arg1: i32) -> (i32, i32, i32) {
    %c0_i32 = arith.constant 0 : i32
    %c0_i32_0 = arith.constant 0 : i32
    %c0_i32_1 = arith.constant 0 : i32
    return %arg1, %c0_i32, %c0_i32_0 : i32, i32, i32
  }
  func.func @transform_2(%arg0: i32, %arg1: i32) -> (i32, i32, i32) {
    %c0_i32 = arith.constant 0 : i32
    %c0_i32_0 = arith.constant 0 : i32
    %c0_i32_1 = arith.constant 0 : i32
    return %arg1, %c0_i32, %c0_i32_0 : i32, i32, i32
  }
  func.func @transform_3(%arg0: i32, %arg1: i32) -> (i32, i32, i32) {
    %c0_i32 = arith.constant 0 : i32
    %c0_i32_0 = arith.constant 0 : i32
    %c0_i32_1 = arith.constant 0 : i32
    return %arg1, %c0_i32, %c0_i32_0 : i32, i32, i32
  }
  func.func @transform_4(%arg0: i32, %arg1: i32) -> (i32, i32, i32) {
    %c0_i32 = arith.constant 0 : i32
    %c0_i32_0 = arith.constant 0 : i32
    %c0_i32_1 = arith.constant 0 : i32
    return %arg1, %c0_i32, %c0_i32_0 : i32, i32, i32
  }
  func.func @transform_5(%arg0: i32, %arg1: i32) -> (i32, i32, i32) {
    %c0_i32 = arith.constant 0 : i32
    %c0_i32_0 = arith.constant 0 : i32
    %c0_i32_1 = arith.constant 0 : i32
    return %arg1, %c0_i32, %c0_i32_0 : i32, i32, i32
  }
  func.func @transform_6(%arg0: i32, %arg1: i32) -> (i32, i32, i32) {
    %c0_i32 = arith.constant 0 : i32
    %c0_i32_0 = arith.constant 0 : i32
    %c0_i32_1 = arith.constant 0 : i32
    return %arg1, %c0_i32, %c0_i32_0 : i32, i32, i32
  }
  func.func @transform_7(%arg0: i32, %arg1: i32) -> (i32, i32, i32) {
    %c0_i32 = arith.constant 0 : i32
    %c0_i32_0 = arith.constant 0 : i32
    %c0_i32_1 = arith.constant 0 : i32
    return %arg1, %c0_i32, %c0_i32_0 : i32, i32, i32
  }
  func.func @transform_8(%arg0: i32, %arg1: i32) -> (i32, i32, i32) {
    %c0_i32 = arith.constant 0 : i32
    %c0_i32_0 = arith.constant 0 : i32
    %c0_i32_1 = arith.constant 0 : i32
    return %arg1, %c0_i32, %c0_i32_0 : i32, i32, i32
  }
  func.func @transform_9(%arg0: i32, %arg1: i32) -> (i32, i32, i32) {
    %c0_i32 = arith.constant 0 : i32
    %c0_i32_0 = arith.constant 0 : i32
    %c0_i32_1 = arith.constant 0 : i32
    return %arg1, %c0_i32, %c0_i32_0 : i32, i32, i32
  }
  func.func @transform_10(%arg0: i32, %arg1: i32) -> (i32, i32, i32) {
    %c0_i32 = arith.constant 0 : i32
    %c0_i32_0 = arith.constant 0 : i32
    %c0_i32_1 = arith.constant 0 : i32
    return %arg1, %c0_i32, %c0_i32_0 : i32, i32, i32
  }
  func.func @transform_11(%arg0: i32, %arg1: i32) -> (i32, i32, i32) {
    %c0_i32 = arith.constant 0 : i32
    %c0_i32_0 = arith.constant 0 : i32
    %c0_i32_1 = arith.constant 0 : i32
    return %arg1, %c0_i32, %c0_i32_0 : i32, i32, i32
  }
  func.func @transform_12(%arg0: i32, %arg1: i32) -> (i32, i32, i32) {
    %c0_i32 = arith.constant 0 : i32
    %c0_i32_0 = arith.constant 0 : i32
    %c0_i32_1 = arith.constant 0 : i32
    return %arg1, %c0_i32, %c0_i32_0 : i32, i32, i32
  }
  func.func @transform_13(%arg0: i32, %arg1: i32) -> (i32, i32, i32) {
    %c0_i32 = arith.constant 0 : i32
    %c0_i32_0 = arith.constant 0 : i32
    %c0_i32_1 = arith.constant 0 : i32
    return %arg0, %c0_i32, %c0_i32_0 : i32, i32, i32
  }
}

</mosaic_0001>

<llo_original>
// kernel: conv_block_forward.2
$region0: #{conv_block_forward.2}
  #allocation0 [shape = 'u32[]', space=smem, size = 0x4, offset = 0x4, fixed_abs, tag = 'smem constant byte address 0x4 - core index']
  #allocation1 [shape = 'u32[72,128]{1,0:T(1,128)}', space=vmem, size = 0x9000, scoped, tag = 'internal scratch']
  #allocation2 [shape = 'f32[16,8]{1,0:T(8,128)}', space=vmem, size = 0x2000, scoped, tag = 'scratch operand']
  %s0 = inlined_call_operand.vmem [shape: f32[2,16,4], index: 0, kind: input, shape index: {}]
  %s1 = inlined_call_operand.vmem [shape: bf16[3,4,8], index: 1, kind: input, shape index: {}]
  %s2 = inlined_call_operand.vmem [shape: f32[1,8], index: 2, kind: input, shape index: {}]
  %s3 = inlined_call_operand.vmem [shape: f32[1,8], index: 3, kind: input, shape index: {}]
  %s4 = inlined_call_operand.vmem [shape: f32[1,8], index: 4, kind: input, shape index: {}]
  %s5 = inlined_call_operand.vmem [shape: bf16[3,8,8], index: 5, kind: input, shape index: {}]
  %s6 = inlined_call_operand.vmem [shape: f32[1,8], index: 6, kind: input, shape index: {}]
  %s7 = inlined_call_operand.hbm [shape: f32[1,8], index: 7, kind: input, shape index: {}]
  %s8 = inlined_call_operand.hbm [shape: f32[1,8], index: 8, kind: input, shape index: {}]
  %s9 = inlined_call_operand.vmem [shape: f32[2,8,8], index: 9, kind: output, shape index: {}]
  %s10 = sld [smem:[#allocation0]]
  $region77: #{conv_block_forward.2} parent=0
    _
  %s12 = ssub.s32 1, %s10
  %s13 = scalar_select 0, %s12, %s10
  $region1: #{conv_block_forward.2} parent=0
    #allocation3 [shape = 'u8[512]{0}', space=vmem, size = 0x400, scoped, tag = 'input window, operand 7, single buffered']
    #allocation4 [shape = 's32[2]{0}', space=sflag, size = 0x8, scoped, tag = 'scoped memory for conv_block_forward.2']
    #allocation5 [shape = 'u8[512]{0}', space=vmem, size = 0x400, scoped, tag = 'input window, operand 8, single buffered']
    #allocation6 [shape = 's32[1]{0}', space=sflag, size = 0x4, scoped, tag = 'scoped memory for conv_block_forward.2']
    %14 = vsyncpa [#allocation4], 0
    %15 = vsyncpa [#allocation6], 0
    loop: start=0, step=1, limit=4
    $region2: #{conv_block_forward.2} parent=1 // loop_pre_header
      _
    $region3: #{conv_block_forward.2} parent=1 // loop_header
      %s17 = sphi 0, %s21
      %p18 = scmp.ge.s32.totalorder %s17, 4
      %s27 = sphi 0, %s29
      %s30 = sphi 0, %s27
      %s31 = sphi 0, %s30
      %s47 = sphi 0, %s31
      %s51 = sphi 0, %s51
      %s53 = sphi 0, %s51
      %s54 = sphi 0, %s53
      %s68 = sphi 0, %s54
      %s72 = sphi 0, %s72
      %s74 = sphi 0, %s72
      %s75 = sphi 0, %s74
      %s89 = sphi 0, %s75
      %s93 = sphi 0, %s93
      %s95 = sphi 0, %s93
      %s96 = sphi 0, %s95
      %s110 = sphi 0, %s96
      %s114 = sphi 0, %s114
      %s116 = sphi 0, %s114
      %s117 = sphi 0, %s116
      %s131 = sphi 0, %s117
      %s135 = sphi 0, %s135
      %s137 = sphi 0, %s135
      %s138 = sphi 0, %s137
      %s152 = sphi 0, %s138
      %s156 = sphi 0, %s156
      %s158 = sphi 0, %s156
      %s159 = sphi 0, %s158
      %s173 = sphi 0, %s159
      %s177 = sphi 0, %s177
      %s179 = sphi 0, %s177
      %s180 = sphi 0, %s179
      %s194 = sphi 0, %s180
      %s198 = sphi 0, %s198
      %s200 = sphi 0, %s198
      %s201 = sphi 0, %s200
      %s215 = sphi 0, %s201
      %s221 = sphi 0, %s223
      %s224 = sphi 0, %s221
      %s225 = sphi 0, %s224
      %s241 = sphi 0, %s225
    $region4: #{conv_block_forward.2} parent=1 // loop_header_branch
      %20 = sbr.rel (%p18) target = $region8
    $region5: #{conv_block_forward.2} parent=1 // loop_body
      %s22 = ssub.s32 %s17, 1
      %s23 = ssub.s32 %s17, 2
      %s24 = sadd.s32 %s17, 1
      %s25 = ssub.s32 %s17, %s24
      %p26 = scmp.eq.s32.totalorder %s25, 0
      %s28 = sadd.s32 %s27, 1
      %s29 = scalar_select %p26, %s27, %s28
      %p32 = pneg %p26
      %p33 = scmp.eq.s32.totalorder %s17, 1
      %p34 = por %p32, %p33
      %p35 = scmp.ne.s32.totalorder %s27, %s30
      %p36 = scmp.eq.s32.totalorder %s17, 0
      %p37 = por %p35, %p36
      %p38 = scmp.ne.s32.totalorder %s27, %s30
      %p39 = scmp.eq.s32.totalorder %s22, 1
      %p40 = por %p38, %p39
      %p41 = scmp.ne.s32.totalorder %s30, %s31
      %p42 = scmp.eq.s32.totalorder %s22, 0
      %p43 = por %p41, %p42
      %p44 = scmp.ne.s32.totalorder %s30, %s31
      %p45 = scmp.eq.s32.totalorder %s23, 1
      %p46 = por %p44, %p45
      %p48 = scmp.ne.s32.totalorder %s31, %s47
      %p49 = scmp.eq.s32.totalorder %s23, 0
      %p50 = por %p48, %p49
      %s52 = sadd.s32 %s51, 1
      %p55 = scmp.eq.s32.totalorder %s17, 1
      %p56 = scmp.ne.s32.totalorder %s51, %s53
      %p57 = scmp.eq.s32.totalorder %s17, 0
      %p58 = por %p56, %p57
      %p59 = scmp.ne.s32.totalorder %s51, %s53
      %p60 = scmp.eq.s32.totalorder %s22, 1
      %p61 = por %p59, %p60
      %p62 = scmp.ne.s32.totalorder %s53, %s54
      %p63 = scmp.eq.s32.totalorder %s22, 0
      %p64 = por %p62, %p63
      %p65 = scmp.ne.s32.totalorder %s53, %s54
      %p66 = scmp.eq.s32.totalorder %s23, 1
      %p67 = por %p65, %p66
      %p69 = scmp.ne.s32.totalorder %s54, %s68
      %p70 = scmp.eq.s32.totalorder %s23, 0
      %p71 = por %p69, %p70
      %s73 = sadd.s32 %s72, 1
      %p76 = scmp.eq.s32.totalorder %s17, 1
      %p77 = scmp.ne.s32.totalorder %s72, %s74
      %p78 = scmp.eq.s32.totalorder %s17, 0
      %p79 = por %p77, %p78
      %p80 = scmp.ne.s32.totalorder %s72, %s74
      %p81 = scmp.eq.s32.totalorder %s22, 1
      %p82 = por %p80, %p81
      %p83 = scmp.ne.s32.totalorder %s74, %s75
      %p84 = scmp.eq.s32.totalorder %s22, 0
      %p85 = por %p83, %p84
      %p86 = scmp.ne.s32.totalorder %s74, %s75
      %p87 = scmp.eq.s32.totalorder %s23, 1
      %p88 = por %p86, %p87
      %p90 = scmp.ne.s32.totalorder %s75, %s89
      %p91 = scmp.eq.s32.totalorder %s23, 0
      %p92 = por %p90, %p91
      %s94 = sadd.s32 %s93, 1
      %p97 = scmp.eq.s32.totalorder %s17, 1
      %p98 = scmp.ne.s32.totalorder %s93, %s95
      %p99 = scmp.eq.s32.totalorder %s17, 0
      %p100 = por %p98, %p99
      %p101 = scmp.ne.s32.totalorder %s93, %s95
      %p102 = scmp.eq.s32.totalorder %s22, 1
      %p103 = por %p101, %p102
      %p104 = scmp.ne.s32.totalorder %s95, %s96
      %p105 = scmp.eq.s32.totalorder %s22, 0
      %p106 = por %p104, %p105
      %p107 = scmp.ne.s32.totalorder %s95, %s96
      %p108 = scmp.eq.s32.totalorder %s23, 1
      %p109 = por %p107, %p108
      %p111 = scmp.ne.s32.totalorder %s96, %s110
      %p112 = scmp.eq.s32.totalorder %s23, 0
      %p113 = por %p111, %p112
      %s115 = sadd.s32 %s114, 1
      %p118 = scmp.eq.s32.totalorder %s17, 1
      %p119 = scmp.ne.s32.totalorder %s114, %s116
      %p120 = scmp.eq.s32.totalorder %s17, 0
      %p121 = por %p119, %p120
      %p122 = scmp.ne.s32.totalorder %s114, %s116
      %p123 = scmp.eq.s32.totalorder %s22, 1
      %p124 = por %p122, %p123
      %p125 = scmp.ne.s32.totalorder %s116, %s117
      %p126 = scmp.eq.s32.totalorder %s22, 0
      %p127 = por %p125, %p126
      %p128 = scmp.ne.s32.totalorder %s116, %s117
      %p129 = scmp.eq.s32.totalorder %s23, 1
      %p130 = por %p128, %p129
      %p132 = scmp.ne.s32.totalorder %s117, %s131
      %p133 = scmp.eq.s32.totalorder %s23, 0
      %p134 = por %p132, %p133
      %s136 = sadd.s32 %s135, 1
      %p139 = scmp.eq.s32.totalorder %s17, 1
      %p140 = scmp.ne.s32.totalorder %s135, %s137
      %p141 = scmp.eq.s32.totalorder %s17, 0
      %p142 = por %p140, %p141
      %p143 = scmp.ne.s32.totalorder %s135, %s137
      %p144 = scmp.eq.s32.totalorder %s22, 1
      %p145 = por %p143, %p144
      %p146 = scmp.ne.s32.totalorder %s137, %s138
      %p147 = scmp.eq.s32.totalorder %s22, 0
      %p148 = por %p146, %p147
      %p149 = scmp.ne.s32.totalorder %s137, %s138
      %p150 = scmp.eq.s32.totalorder %s23, 1
      %p151 = por %p149, %p150
      %p153 = scmp.ne.s32.totalorder %s138, %s152
      %p154 = scmp.eq.s32.totalorder %s23, 0
      %p155 = por %p153, %p154
      %s157 = sadd.s32 %s156, 1
      %p160 = scmp.eq.s32.totalorder %s17, 1
      %p161 = scmp.ne.s32.totalorder %s156, %s158
      %p162 = scmp.eq.s32.totalorder %s17, 0
      %p163 = por %p161, %p162
      %p164 = scmp.ne.s32.totalorder %s156, %s158
      %p165 = scmp.eq.s32.totalorder %s22, 1
      %p166 = por %p164, %p165
      %p167 = scmp.ne.s32.totalorder %s158, %s159
      %p168 = scmp.eq.s32.totalorder %s22, 0
      %p169 = por %p167, %p168
      %p170 = scmp.ne.s32.totalorder %s158, %s159
      %p171 = scmp.eq.s32.totalorder %s23, 1
      %p172 = por %p170, %p171
      %p174 = scmp.ne.s32.totalorder %s159, %s173
      %p175 = scmp.eq.s32.totalorder %s23, 0
      %p176 = por %p174, %p175
      %s178 = sadd.s32 %s177, 1
      %p181 = scmp.eq.s32.totalorder %s17, 1
      %p182 = scmp.ne.s32.totalorder %s177, %s179
      %p183 = scmp.eq.s32.totalorder %s17, 0
      %p184 = por %p182, %p183
      %p185 = scmp.ne.s32.totalorder %s177, %s179
      %p186 = scmp.eq.s32.totalorder %s22, 1
      %p187 = por %p185, %p186
      %p188 = scmp.ne.s32.totalorder %s179, %s180
      %p189 = scmp.eq.s32.totalorder %s22, 0
      %p190 = por %p188, %p189
      %p191 = scmp.ne.s32.totalorder %s179, %s180
      %p192 = scmp.eq.s32.totalorder %s23, 1
      %p193 = por %p191, %p192
      %p195 = scmp.ne.s32.totalorder %s180, %s194
      %p196 = scmp.eq.s32.totalorder %s23, 0
      %p197 = por %p195, %p196
      %s199 = sadd.s32 %s198, 1
      %p202 = scmp.eq.s32.totalorder %s17, 1
      %p203 = scmp.ne.s32.totalorder %s198, %s200
      %p204 = scmp.eq.s32.totalorder %s17, 0
      %p205 = por %p203, %p204
      %p206 = scmp.ne.s32.totalorder %s198, %s200
      %p207 = scmp.eq.s32.totalorder %s22, 1
      %p208 = por %p206, %p207
      %p209 = scmp.ne.s32.totalorder %s200, %s201
      %p210 = scmp.eq.s32.totalorder %s22, 0
      %p211 = por %p209, %p210
      %p212 = scmp.ne.s32.totalorder %s200, %s201
      %p213 = scmp.eq.s32.totalorder %s23, 1
      %p214 = por %p212, %p213
      %p216 = scmp.ne.s32.totalorder %s201, %s215
      %p217 = scmp.eq.s32.totalorder %s23, 0
      %p218 = por %p216, %p217
      %s219 = ssub.s32 %s17, %s24
      %p220 = scmp.eq.s32.totalorder %s219, 0
      %s222 = sadd.s32 %s221, 1
      %s223 = scalar_select %p220, %s221, %s222
      %p226 = pneg %p220
      %p227 = scmp.eq.s32.totalorder %s17, 1
      %p228 = por %p226, %p227
      %p229 = scmp.ne.s32.totalorder %s221, %s224
      %p230 = scmp.eq.s32.totalorder %s17, 0
      %p231 = por %p229, %p230
      %p232 = scmp.ne.s32.totalorder %s221, %s224
      %p233 = scmp.eq.s32.totalorder %s22, 1
      %p234 = por %p232, %p233
      %p235 = scmp.ne.s32.totalorder %s224, %s225
      %p236 = scmp.eq.s32.totalorder %s22, 0
      %p237 = por %p235, %p236
      %p238 = scmp.ne.s32.totalorder %s224, %s225
      %p239 = scmp.eq.s32.totalorder %s23, 1
      %p240 = por %p238, %p239
      %p242 = scmp.ne.s32.totalorder %s225, %s241
      %p243 = scmp.eq.s32.totalorder %s23, 0
      %p244 = por %p242, %p243
      %p245 = scmp.le.s32.totalorder 1, %s17
      %p246 = scmp.lt.s32.totalorder %s17, 3
      %p247 = pnand %p245, %p246
      %p248 = pneg %p247
      // Predicated region
      $region9: #{conv_block_forward.2} parent=5 // pred_check
        _
      $region10: #{conv_block_forward.2} parent=5 // pred_check_branch
        %250 = sbr.rel (%p247) target = $region12
      $region11: #{conv_block_forward.2} parent=5 // pred_region
        %s251 = ssub.s32 %s17, 1
        // Predicated region
        $region13: #{conv_block_forward.2} parent=11 // pred_check
          %p252 = pneg %p64
        $region14: #{conv_block_forward.2} parent=11 // pred_check_branch
          %254 = sbr.rel (%p252) target = $region16
        $region15: #{conv_block_forward.2} parent=11 // pred_region
          _
        $region16: #{conv_block_forward.2} parent=11 // pred_fallthru
          _
        // Predicated region
        $region17: #{conv_block_forward.2} parent=11 // pred_check
          %p255 = pneg %p85
        $region18: #{conv_block_forward.2} parent=11 // pred_check_branch
          %257 = sbr.rel (%p255) target = $region20
        $region19: #{conv_block_forward.2} parent=11 // pred_region
          _
        $region20: #{conv_block_forward.2} parent=11 // pred_fallthru
          _
        // Predicated region
        $region21: #{conv_block_forward.2} parent=11 // pred_check
          %p258 = pneg %p106
        $region22: #{conv_block_forward.2} parent=11 // pred_check_branch
          %260 = sbr.rel (%p258) target = $region24
        $region23: #{conv_block_forward.2} parent=11 // pred_region
          _
        $region24: #{conv_block_forward.2} parent=11 // pred_fallthru
          _
        // Predicated region
        $region25: #{conv_block_forward.2} parent=11 // pred_check
          %p261 = pneg %p127
        $region26: #{conv_block_forward.2} parent=11 // pred_check_branch
          %263 = sbr.rel (%p261) target = $region28
        $region27: #{conv_block_forward.2} parent=11 // pred_region
          _
        $region28: #{conv_block_forward.2} parent=11 // pred_fallthru
          _
        // Predicated region
        $region29: #{conv_block_forward.2} parent=11 // pred_check
          %p264 = pneg %p148
        $region30: #{conv_block_forward.2} parent=11 // pred_check_branch
          %266 = sbr.rel (%p264) target = $region32
        $region31: #{conv_block_forward.2} parent=11 // pred_region
          _
        $region32: #{conv_block_forward.2} parent=11 // pred_fallthru
          _
        // Predicated region
        $region33: #{conv_block_forward.2} parent=11 // pred_check
          %p267 = pneg %p169
        $region34: #{conv_block_forward.2} parent=11 // pred_check_branch
          %269 = sbr.rel (%p267) target = $region36
        $region35: #{conv_block_forward.2} parent=11 // pred_region
          _
        $region36: #{conv_block_forward.2} parent=11 // pred_fallthru
          _
        // Predicated region
        $region37: #{conv_block_forward.2} parent=11 // pred_check
          %p270 = pneg %p190
        $region38: #{conv_block_forward.2} parent=11 // pred_check_branch
          %272 = sbr.rel (%p270) target = $region40
        $region39: #{conv_block_forward.2} parent=11 // pred_region
          %274 = vsyncadd [#allocation4], 0
          %s276 = sshll.u32 %s7, 4
          %s277 = int_to_ptr.hbm [resolvable:$true] %s276
          %s278 = sshll.u32 [#allocation3], 4
          %s279 = int_to_ptr.vmem [resolvable:$true] %s278
          %281 = dma.hbm_to_vmem [thread:$0]  %s277, 16, %s279, [#allocation4]
        $region40: #{conv_block_forward.2} parent=11 // pred_fallthru
          _
        // Predicated region
        $region41: #{conv_block_forward.2} parent=11 // pred_check
          %p282 = pneg %p211
        $region42: #{conv_block_forward.2} parent=11 // pred_check_branch
          %284 = sbr.rel (%p282) target = $region44
        $region43: #{conv_block_forward.2} parent=11 // pred_region
          %286 = vsyncadd [#allocation6], 0
          %s288 = sshll.u32 %s8, 4
          %s289 = int_to_ptr.hbm [resolvable:$true] %s288
          %s290 = sshll.u32 [#allocation5], 4
          %s291 = int_to_ptr.vmem [resolvable:$true] %s290
          %293 = dma.hbm_to_vmem [thread:$0]  %s289, 16, %s291, [#allocation6]
        $region44: #{conv_block_forward.2} parent=11 // pred_fallthru
          _
      $region12: #{conv_block_forward.2} parent=5 // pred_fallthru
        _
      %p294 = scmp.lt.s32.totalorder %s17, 2
      // Predicated region
      $region45: #{conv_block_forward.2} parent=5 // pred_check
        %p295 = pneg %p294
      $region46: #{conv_block_forward.2} parent=5 // pred_check_branch
        %297 = sbr.rel (%p295) target = $region48
      $region47: #{conv_block_forward.2} parent=5 // pred_region
        // Predicated region
        $region49: #{conv_block_forward.2} parent=47 // pred_check
          %p298 = pneg %p37
        $region50: #{conv_block_forward.2} parent=47 // pred_check_branch
          %300 = sbr.rel (%p298) target = $region52
        $region51: #{conv_block_forward.2} parent=47 // pred_region
          %p301 = scmp.lt.s32.totalorder %s17, 1
          %s302 = scalar_select %p301, %s17, 1
          %s303 = smul.addr %s302, 2
          %s304 = smul.addr %s303, 8
          %s305 = scalar_lea.vmem %s0, %s304
        $region52: #{conv_block_forward.2} parent=47 // pred_fallthru
          _
      $region48: #{conv_block_forward.2} parent=5 // pred_fallthru
        _
      %p306 = scmp.le.s32.totalorder 1, %s17
      %p307 = scmp.lt.s32.totalorder %s17, 3
      %p308 = pnand %p306, %p307
      %p309 = pneg %p308
      // Predicated region
      $region53: #{conv_block_forward.2} parent=5 // pred_check
        _
      $region54: #{conv_block_forward.2} parent=5 // pred_check_branch
        %311 = sbr.rel (%p308) target = $region56
      $region55: #{conv_block_forward.2} parent=5 // pred_region
        %s312 = ssub.s32 %s17, 1
        // Predicated region
        $region57: #{conv_block_forward.2} parent=55 // pred_check
          %p313 = pneg %p190
        $region58: #{conv_block_forward.2} parent=55 // pred_check_branch
          %315 = sbr.rel (%p313) target = $region60
        $region59: #{conv_block_forward.2} parent=55 // pred_region
          %317 = dma.done [#allocation4], 16
        $region60: #{conv_block_forward.2} parent=55 // pred_fallthru
          _
        // Predicated region
        $region61: #{conv_block_forward.2} parent=55 // pred_check
          %p318 = pneg %p211
        $region62: #{conv_block_forward.2} parent=55 // pred_check_branch
          %320 = sbr.rel (%p318) target = $region64
        $region63: #{conv_block_forward.2} parent=55 // pred_region
          %322 = dma.done [#allocation6], 16
        $region64: #{conv_block_forward.2} parent=55 // pred_fallthru
          _
        %p323 = scmp.lt.s32.totalorder %s22, 1
        %s324 = scalar_select %p323, %s22, 1
        %s325 = smul.addr %s324, 2
        %s326 = smul.addr %s325, 8
        %s327 = scalar_lea.vmem %s0, %s326
        %p328 = pneg %p43
        %p329 = pneg %p40
        %p330 = pneg %p64
        %p331 = pneg %p61
        %p332 = pneg %p85
        %p333 = pneg %p82
        %p334 = pneg %p106
        %p335 = pneg %p103
        %p336 = pneg %p127
        %p337 = pneg %p124
        %p338 = pneg %p148
        %p339 = pneg %p145
        %p340 = pneg %p169
        %p341 = pneg %p166
        %p342 = pneg %p190
        %p343 = pneg %p187
        %p344 = pneg %p211
        %p345 = pneg %p208
        %p346 = pneg %p237
        %p347 = pneg %p234
        %p348 = scmp.lt.s32.totalorder %s22, 1
        %s349 = scalar_select %p348, %s22, 1
        %s350 = smul.addr %s349, 8
        %s351 = scalar_lea.vmem %s9, %s350
        %p352 = scmp.lt.s32.totalorder %s22, 1
        %s353 = scalar_select %p352, %s22, 1
        %s354 = smul.addr %s353, 2
        %s355 = smul.addr %s354, 8
        %s356 = scalar_lea.vmem %s0, %s355
        %p357 = scmp.lt.s32.totalorder %s22, 1
        %s358 = scalar_select %p357, %s22, 1
        %s359 = smul.addr %s358, 8
        %s360 = scalar_lea.vmem %s9, %s359
        %v362 = vld [vmem:[%s356] sm:$0xff]
        %v363 = vld [vmem:[%s356 + $0x8] sm:$0xff]
        %v364 = vld [vmem:[%s2] sm:$0x1]
        %v365 = vld [vmem:[%s3] sm:$0x1]
        %v366 = vld [vmem:[%s4] sm:$0x1]
        %v367 = vpack.c.bf16 %v363, %v362
        %v368 = vld [vmem:[%s1] sm:$0x3]
        %s369 = scalar_lea.vmem %s1, 2
        %v370 = vld [vmem:[%s369] sm:$0x3]
        %vm371 = vcmask 31744
        %v373 = vsel %vm371, %v367, 0
        %vm375 = vcmask 1041408
        %v377 = vsel %vm375, %v370, 0
        %379 = vmatpush.bf16.msra.mxu0 0
        %380 = vmatpush.bf16.msra.mxu0 0
        %381 = vmatpush.bf16.msra.mxu0 0
        %382 = vmatpush.bf16.msra.mxu0 0
        %383 = vmatpush.bf16.msra.mxu0 0
        %384 = vmatpush.bf16.msra.mxu0 0
        %385 = vmatpush.bf16.msra.mxu0 0
        %386 = vmatpush.bf16.msra.mxu0 %v377
        %387 = vmatmul.bf16.gmra.mxu0 %v373
        %v388 = vpop.f32.mrf.mxu0
        %v389 = vadd.f32 0.0, %v388
        %v390 = vpop.f32.mrf.mxu0
        %v391 = vadd.f32 0.0, %v390
        %392 = vdwg.mxu0
        %vm395 = vcmask 1046528
        %v396 = vrot.slane %v389, 1
        %v397 = vrot.slane %v391, 1
        %v398 = vsel %vm395, %v396, %v397
        %v401 = vsel %vm395, %v397, 0.0
        %v403 = vsel %vm375, %v368, 0
        %405 = vmatpush.bf16.msra.mxu0 0
        %406 = vmatpush.bf16.msra.mxu0 0
        %407 = vmatpush.bf16.msra.mxu0 0
        %408 = vmatpush.bf16.msra.mxu0 0
        %409 = vmatpush.bf16.msra.mxu0 0
        %410 = vmatpush.bf16.msra.mxu0 0
        %411 = vmatpush.bf16.msra.mxu0 0
        %412 = vmatpush.bf16.msra.mxu0 %v403
        %413 = vmatmul.bf16.gmra.mxu0 %v373
        %v414 = vpop.f32.mrf.mxu0
        %v415 = vadd.f32 %v398, %v414
        %v416 = vpop.f32.mrf.mxu0
        %v417 = vadd.f32 %v401, %v416
        %418 = vdwg.mxu0
        %s419 = scalar_lea.vmem %s1, 4
        %v420 = vld [vmem:[%s419] sm:$0x3]
        %v422 = vsel %vm375, %v420, 0
        %424 = vmatpush.bf16.msra.mxu0 0
        %425 = vmatpush.bf16.msra.mxu0 0
        %426 = vmatpush.bf16.msra.mxu0 0
        %427 = vmatpush.bf16.msra.mxu0 0
        %428 = vmatpush.bf16.msra.mxu0 0
        %429 = vmatpush.bf16.msra.mxu0 0
        %430 = vmatpush.bf16.msra.mxu0 0
        %431 = vmatpush.bf16.msra.mxu0 %v422
        %432 = vmatmul.bf16.gmra.mxu0 %v373
        %v433 = vpop.f32.mrf.mxu0
        %v434 = vadd.f32 0.0, %v433
        %v435 = vpop.f32.mrf.mxu0
        %v436 = vadd.f32 0.0, %v435
        %437 = vdwg.mxu0
        %vm440 = vcmask 1045504
        %v441 = vrot.slane %v434, 2
        %v442 = vrot.slane %v436, 2
        %v443 = vsel %vm440, %v441, %v442
        %v446 = vsel %vm440, %v442, 0.0
        %v447 = vadd.f32 %v415, %v443
        %v448 = vadd.f32 %v417, %v446
        %v450 = vperm.slane %v364, 0
        %v452 = vadd.f32 %v447, %v450
        %v453 = vadd.f32 %v448, %v450
        %vm454 = vcmask 64512
        %v455 = vsel %vm454, %v452, 0.0
        %456 = vadd.xlane.f32.xlu0 %v455
        %v457 = vpop.xlane.xlu0 %456
        %v458 = vsel %vm454, %v453, 0.0
        %459 = vadd.xlane.f32.xlu0 %v458
        %v460 = vpop.xlane.xlu0 %459
        %v461 = vrcp.pop 8.0
        %v462 = vmul.f32 8.0, %v461
        %v463 = vsub.f32 1.0, %v462
        %v464 = vmul.f32 %v461, %v463
        %v465 = vadd.f32 %v461, %v464
        %vm466 = vweird.f32 %v461
        %v467 = vsel %vm466, %v461, %v465
        %v468 = vmul.f32 %v457, %v467
        %v469 = vmul.f32 %v460, %v467
        %v470 = vsub.f32 %v452, %v468
        %v471 = vsub.f32 %v453, %v469
        %v472 = vmul.f32 %v470, %v470
        %v473 = vmul.f32 %v471, %v471
        %v474 = vsel %vm454, %v472, 0.0
        %475 = vadd.xlane.f32.xlu0 %v474
        %v476 = vpop.xlane.xlu0 %475
        %v477 = vsel %vm454, %v473, 0.0
        %478 = vadd.xlane.f32.xlu0 %v477
        %v479 = vpop.xlane.xlu0 %478
        %v480 = vmul.f32 %v476, %v467
        %v481 = vmul.f32 %v479, %v467
        %v482 = vadd.f32 %v480, 1e-05
        %v483 = vadd.f32 %v481, 1e-05
        %v484 = vrsqrt.pop %v482
        %v485 = vmul.f32 %v484, %v482
        %v486 = vmul.f32 %v485, %v484
        %v487 = vmul.f32 0.5, %v486
        %v488 = vsub.f32 1.5, %v487
        %v489 = vmul.f32 %v484, %v488
        %vm490 = vweird.f32 %v482
        %vm491 = vweird.f32 %v484
        %vm492 = vmor %vm490, %vm491
        %v493 = vsel %vm492, %v484, %v489
        %v494 = vrsqrt.pop %v483
        %v495 = vmul.f32 %v494, %v483
        %v496 = vmul.f32 %v495, %v494
        %v497 = vmul.f32 0.5, %v496
        %v498 = vsub.f32 1.5, %v497
        %v499 = vmul.f32 %v494, %v498
        %vm500 = vweird.f32 %v483
        %vm501 = vweird.f32 %v494
        %vm502 = vmor %vm500, %vm501
        %v503 = vsel %vm502, %v494, %v499
        %v504 = vmul.f32 %v470, %v493
        %v505 = vmul.f32 %v471, %v503
        %v507 = vperm.slane %v365, 0
        %v509 = vmul.f32 %v504, %v507
        %v510 = vmul.f32 %v505, %v507
        %v512 = vperm.slane %v366, 0
        %v514 = vadd.f32 %v509, %v512
        %v515 = vadd.f32 %v510, %v512
        %vm516 = vcmp.ge.f32.partialorder %v514, 0.0
        %vm517 = vcmp.ge.f32.partialorder %v515, 0.0
        %v518 = vmul.f32 %v514, 0.1
        %v519 = vmul.f32 %v515, 0.1
        %v520 = vsel %vm516, %v514, %v518
        %v521 = vsel %vm517, %v515, %v519
        %v522 = vld [vmem:[%s6] sm:$0x1]
        %v523 = vld [vmem:[#allocation3] sm:$0x1]
        %v524 = vld [vmem:[#allocation5] sm:$0x1]
        %v525 = vpack.c.bf16 %v521, %v520
        %v526 = vld [vmem:[%s5] sm:$0xf]
        %s527 = scalar_lea.vmem %s5, 4
        %v528 = vld [vmem:[%s527] sm:$0xf]
        %v530 = vsel %vm454, %v525, 0
        %vm532 = vcmask 1043456
        %v534 = vsel %vm532, %v528, 0
        %536 = vmatpush.bf16.msra.mxu0 0
        %537 = vmatpush.bf16.msra.mxu0 0
        %538 = vmatpush.bf16.msra.mxu0 0
        %539 = vmatpush.bf16.msra.mxu0 0
        %540 = vmatpush.bf16.msra.mxu0 0
        %541 = vmatpush.bf16.msra.mxu0 0
        %542 = vmatpush.bf16.msra.mxu0 0
        %543 = vmatpush.bf16.msra.mxu0 %v534
        %544 = vmatmul.bf16.gmra.mxu0 %v530
        %v545 = vpop.f32.mrf.mxu0
        %v546 = vadd.f32 0.0, %v545
        %v547 = vpop.f32.mrf.mxu0
        %v548 = vadd.f32 0.0, %v547
        %549 = vdwg.mxu0
        %v552 = vrot.slane %v546, 1
        %v553 = vrot.slane %v548, 1
        %v554 = vsel %vm395, %v552, %v553
        %v557 = vsel %vm395, %v553, 0.0
        %v559 = vsel %vm532, %v526, 0
        %561 = vmatpush.bf16.msra.mxu0 0
        %562 = vmatpush.bf16.msra.mxu0 0
        %563 = vmatpush.bf16.msra.mxu0 0
        %564 = vmatpush.bf16.msra.mxu0 0
        %565 = vmatpush.bf16.msra.mxu0 0
        %566 = vmatpush.bf16.msra.mxu0 0
        %567 = vmatpush.bf16.msra.mxu0 0
        %568 = vmatpush.bf16.msra.mxu0 %v559
        %569 = vmatmul.bf16.gmra.mxu0 %v530
        %v570 = vpop.f32.mrf.mxu0
        %v571 = vadd.f32 %v554, %v570
        %v572 = vpop.f32.mrf.mxu0
        %v573 = vadd.f32 %v557, %v572
        %574 = vdwg.mxu0
        %s575 = scalar_lea.vmem %s5, 8
        %v576 = vld [vmem:[%s575] sm:$0xf]
        %v578 = vsel %vm532, %v576, 0
        %580 = vmatpush.bf16.msra.mxu0 0
        %581 = vmatpush.bf16.msra.mxu0 0
        %582 = vmatpush.bf16.msra.mxu0 0
        %583 = vmatpush.bf16.msra.mxu0 0
        %584 = vmatpush.bf16.msra.mxu0 0
        %585 = vmatpush.bf16.msra.mxu0 0
        %586 = vmatpush.bf16.msra.mxu0 0
        %587 = vmatpush.bf16.msra.mxu0 %v578
        %588 = vmatmul.bf16.gmra.mxu0 %v530
        %v589 = vpop.f32.mrf.mxu0
        %v590 = vadd.f32 0.0, %v589
        %v591 = vpop.f32.mrf.mxu0
        %v592 = vadd.f32 0.0, %v591
        %593 = vdwg.mxu0
        %v596 = vrot.slane %v590, 2
        %v597 = vrot.slane %v592, 2
        %v598 = vsel %vm440, %v596, %v597
        %v601 = vsel %vm440, %v597, 0.0
        %v602 = vadd.f32 %v571, %v598
        %v603 = vadd.f32 %v573, %v601
        %v605 = vperm.slane %v522, 0
        %v607 = vadd.f32 %v602, %v605
        %v608 = vadd.f32 %v603, %v605
        %v609 = vsel %vm454, %v607, 0.0
        %610 = vadd.xlane.f32.xlu0 %v609
        %v611 = vpop.xlane.xlu0 %610
        %v612 = vsel %vm454, %v608, 0.0
        %613 = vadd.xlane.f32.xlu0 %v612
        %v614 = vpop.xlane.xlu0 %613
        %v615 = vmul.f32 %v611, %v467
        %v616 = vmul.f32 %v614, %v467
        %v617 = vsub.f32 %v607, %v615
        %v618 = vsub.f32 %v608, %v616
        %v619 = vmul.f32 %v617, %v617
        %v620 = vmul.f32 %v618, %v618
        %v621 = vsel %vm454, %v619, 0.0
        %622 = vadd.xlane.f32.xlu0 %v621
        %v623 = vpop.xlane.xlu0 %622
        %v624 = vsel %vm454, %v620, 0.0
        %625 = vadd.xlane.f32.xlu0 %v624
        %v626 = vpop.xlane.xlu0 %625
        %v627 = vmul.f32 %v623, %v467
        %v628 = vmul.f32 %v626, %v467
        %v629 = vadd.f32 %v627, 1e-05
        %v630 = vadd.f32 %v628, 1e-05
        %v631 = vrsqrt.pop %v629
        %v632 = vmul.f32 %v631, %v629
        %v633 = vmul.f32 %v632, %v631
        %v634 = vmul.f32 0.5, %v633
        %v635 = vsub.f32 1.5, %v634
        %v636 = vmul.f32 %v631, %v635
        %vm637 = vweird.f32 %v629
        %vm638 = vweird.f32 %v631
        %vm639 = vmor %vm637, %vm638
        %v640 = vsel %vm639, %v631, %v636
        %v641 = vrsqrt.pop %v630
        %v642 = vmul.f32 %v641, %v630
        %v643 = vmul.f32 %v642, %v641
        %v644 = vmul.f32 0.5, %v643
        %v645 = vsub.f32 1.5, %v644
        %v646 = vmul.f32 %v641, %v645
        %vm647 = vweird.f32 %v630
        %vm648 = vweird.f32 %v641
        %vm649 = vmor %vm647, %vm648
        %v650 = vsel %vm649, %v641, %v646
        %v651 = vmul.f32 %v617, %v640
        %v652 = vmul.f32 %v618, %v650
        %v654 = vperm.slane %v523, 0
        %v656 = vmul.f32 %v651, %v654
        %v657 = vmul.f32 %v652, %v654
        %v659 = vperm.slane %v524, 0
        %v661 = vadd.f32 %v656, %v659
        %v662 = vadd.f32 %v657, %v659
        %vm663 = vcmp.ge.f32.partialorder %v661, 0.0
        %vm664 = vcmp.ge.f32.partialorder %v662, 0.0
        %v665 = vmul.f32 %v661, 0.1
        %v666 = vmul.f32 %v662, 0.1
        %v667 = vsel %vm663, %v661, %v665
        %v668 = vsel %vm664, %v662, %v666
        %v669 = vadd.f32 %v520, %v667
        %v670 = vadd.f32 %v521, %v668
        %671 = vst.msk [vmem:[#allocation2] sm:$0xff] %vm454, %v669
        %672 = vst.msk [vmem:[#allocation2 + $0x8] sm:$0xff] %vm454, %v670
        %v673 = vld [vmem:[#allocation2] ss:$2 sm:$0xff]
        %s674 = scalar_lea.vmem [#allocation2], 1
        %v675 = vld [vmem:[%s674] ss:$2 sm:$0xff]
        %v676 = vadd.f32 %v673, %v675
        %v677 = vmul.f32 %v676, 0.5
        %678 = vst.msk [vmem:[%s360] sm:$0xff] %vm454, %v677
        %p679 = scmp.lt.s32.totalorder %s22, 1
        %s680 = scalar_select %p679, %s22, 1
        %s681 = smul.addr %s680, 8
        %s682 = scalar_lea.vmem %s9, %s681
        // Predicated region
        $region65: #{conv_block_forward.2} parent=55 // pred_check
          %p683 = pneg %p234
        $region66: #{conv_block_forward.2} parent=55 // pred_check_branch
          %685 = sbr.rel (%p683) target = $region68
        $region67: #{conv_block_forward.2} parent=55 // pred_region
          _
        $region68: #{conv_block_forward.2} parent=55 // pred_fallthru
          _
      $region56: #{conv_block_forward.2} parent=5 // pred_fallthru
        _
      %p686 = scmp.le.s32.totalorder 2, %s17
      // Predicated region
      $region69: #{conv_block_forward.2} parent=5 // pred_check
        %p687 = pneg %p686
      $region70: #{conv_block_forward.2} parent=5 // pred_check_branch
        %689 = sbr.rel (%p687) target = $region72
      $region71: #{conv_block_forward.2} parent=5 // pred_region
        %s690 = ssub.s32 %s17, 2
        // Predicated region
        $region73: #{conv_block_forward.2} parent=71 // pred_check
          %p691 = pneg %p240
        $region74: #{conv_block_forward.2} parent=71 // pred_check_branch
          %693 = sbr.rel (%p691) target = $region76
        $region75: #{conv_block_forward.2} parent=71 // pred_region
          %p694 = scmp.lt.s32.totalorder %s23, 1
          %s695 = scalar_select %p694, %s23, 1
          %s696 = smul.addr %s695, 8
          %s697 = scalar_lea.vmem %s9, %s696
        $region76: #{conv_block_forward.2} parent=71 // pred_fallthru
          _
      $region72: #{conv_block_forward.2} parent=5 // pred_fallthru
        _
    $region6: #{conv_block_forward.2} parent=1 // loop_footer
      %s21 = sadd.s32 1, %s17
    $region7: #{conv_block_forward.2} parent=1 // loop_footer_branch
      %16 = sbr.rel target = $region3
    $region8: #{conv_block_forward.2} parent=1 // loop_exit
      _
    %698 = vsyncpa [#allocation4], 1
    %s699 = scalar_lea.sflag [#allocation4], 1
    %700 = vsyncpa %s699, 1
    %701 = vsyncpa [#allocation6], 1

// kernel: conv_block_forward.3
$region0: #{conv_block_forward.3}
  #allocation0 [shape = 'u32[]', space=smem, size = 0x4, offset = 0x4, fixed_abs, tag = 'smem constant byte address 0x4 - core index']
  #allocation1 [shape = 'u32[72,128]{1,0:T(1,128)}', space=vmem, size = 0x9000, scoped, tag = 'internal scratch']
  #allocation2 [shape = 'f32[8,8]{1,0:T(8,128)}', space=vmem, size = 0x1000, scoped, tag = 'scratch operand']
  #allocation3 [shape = 'f32[8,16]{1,0:T(8,128)}', space=vmem, size = 0x1000, scoped, tag = 'scratch operand']
  #allocation4 [shape = 'f32[8,16]{1,0:T(8,128)}', space=vmem, size = 0x1000, scoped, tag = 'scratch operand']
  #allocation5 [shape = 'f32[8,16]{1,0:T(8,128)}', space=vmem, size = 0x1000, scoped, tag = 'scratch operand']
  #allocation6 [shape = 'f32[8,16]{1,0:T(8,128)}', space=vmem, size = 0x1000, scoped, tag = 'scratch operand']
  %s0 = inlined_call_operand.vmem [shape: f32[2,8,8], index: 0, kind: input, shape index: {}]
  %s1 = inlined_call_operand.hbm [shape: f32[2,1,8], index: 1, kind: input, shape index: {}]
  %s2 = inlined_call_operand.hbm [shape: f32[2,1,8], index: 2, kind: input, shape index: {}]
  %s3 = inlined_call_operand.hbm [shape: bf16[2,8,16], index: 3, kind: input, shape index: {}]
  %s4 = inlined_call_operand.hbm [shape: bf16[2,8,16], index: 4, kind: input, shape index: {}]
  %s5 = inlined_call_operand.vmem [shape: f32[2,3,16], index: 5, kind: input, shape index: {}]
  %s6 = inlined_call_operand.vmem [shape: f32[2,1,16], index: 6, kind: input, shape index: {}]
  %s7 = inlined_call_operand.vmem [shape: bf16[2,16,16], index: 7, kind: input, shape index: {}]
  %s8 = inlined_call_operand.hbm [shape: f32[2,1,16], index: 8, kind: input, shape index: {}]
  %s9 = inlined_call_operand.vmem [shape: bf16[2,16,16], index: 9, kind: input, shape index: {}]
  %s10 = inlined_call_operand.vmem [shape: f32[2,8,16], index: 10, kind: input, shape index: {}]
  %s11 = inlined_call_operand.vmem [shape: f32[2,1,16], index: 11, kind: input, shape index: {}]
  %s12 = inlined_call_operand.vmem [shape: bf16[2,16,8], index: 12, kind: input, shape index: {}]
  %s13 = inlined_call_operand.vmem [shape: f32[2,8,8], index: 13, kind: output, shape index: {}]
  %s14 = sld [smem:[#allocation0]]
  $region113: #{conv_block_forward.3} parent=0
    _
  %s16 = ssub.s32 1, %s14
  %s17 = scalar_select 0, %s16, %s14
  $region1: #{conv_block_forward.3} parent=0
    #allocation7 [shape = 'u8[1024]{0}', space=vmem, size = 0x400, scoped, tag = 'input window, operand 1']
    #allocation8 [shape = 's32[2]{0}', space=sflag, size = 0x8, scoped, tag = 'scoped memory for conv_block_forward.3']
    #allocation9 [shape = 'u8[1024]{0}', space=vmem, size = 0x400, scoped, tag = 'input window, operand 2']
    #allocation10 [shape = 's32[2]{0}', space=sflag, size = 0x8, scoped, tag = 'scoped memory for conv_block_forward.3']
    #allocation11 [shape = 'u8[4096]{0}', space=vmem, size = 0x1000, scoped, tag = 'input window, operand 3']
    #allocation12 [shape = 'u8[4096]{0}', space=vmem, size = 0x1000, scoped, tag = 'input window, operand 4']
    #allocation13 [shape = 's32[2]{0}', space=sflag, size = 0x8, scoped, tag = 'scoped memory for conv_block_forward.3']
    #allocation14 [shape = 'u8[1024]{0}', space=vmem, size = 0x400, scoped, tag = 'input window, operand 8']
    %18 = vsyncpa [#allocation8], 0
    %s19 = scalar_lea.sflag [#allocation8], 1
    %20 = vsyncpa %s19, 0
    %21 = vsyncpa [#allocation10], 0
    %s22 = scalar_lea.sflag [#allocation10], 1
    %23 = vsyncpa %s22, 0
    %24 = vsyncpa [#allocation13], 0
    %s25 = scalar_lea.sflag [#allocation13], 1
    %26 = vsyncpa %s25, 0
    loop: start=0, step=1, limit=6
    $region2: #{conv_block_forward.3} parent=1 // loop_pre_header
      _
    $region3: #{conv_block_forward.3} parent=1 // loop_header
      %s28 = sphi 0, %s32
      %p29 = scmp.ge.s32.totalorder %s28, 6
      %s35 = sphi 0, %s47
      %s36 = sphi 0, %s43
      %s37 = sphi 0, %s35
      %s38 = sphi 0, %s36
      %s39 = sphi 0, %s37
      %s40 = sphi 0, %s38
      %s50 = sphi 0, %s52
      %s53 = sphi 0, %s50
      %s54 = sphi 0, %s53
      %s70 = sphi 0, %s54
      %s76 = sphi 0, %s78
      %s79 = sphi 0, %s76
      %s80 = sphi 0, %s79
      %s96 = sphi 0, %s80
      %s102 = sphi 0, %s104
      %s105 = sphi 0, %s102
      %s106 = sphi 0, %s105
      %s122 = sphi 0, %s106
      %s128 = sphi 0, %s130
      %s131 = sphi 0, %s128
      %s132 = sphi 0, %s131
      %s148 = sphi 0, %s132
      %s154 = sphi 0, %s156
      %s157 = sphi 0, %s154
      %s158 = sphi 0, %s157
      %s174 = sphi 0, %s158
      %s180 = sphi 0, %s182
      %s183 = sphi 0, %s180
      %s184 = sphi 0, %s183
      %s200 = sphi 0, %s184
      %s206 = sphi 0, %s208
      %s209 = sphi 0, %s206
      %s210 = sphi 0, %s209
      %s226 = sphi 0, %s210
      %s232 = sphi 0, %s234
      %s235 = sphi 0, %s232
      %s236 = sphi 0, %s235
      %s252 = sphi 0, %s236
      %s258 = sphi 0, %s260
      %s261 = sphi 0, %s258
      %s262 = sphi 0, %s261
      %s278 = sphi 0, %s262
      %s284 = sphi 0, %s286
      %s287 = sphi 0, %s284
      %s288 = sphi 0, %s287
      %s304 = sphi 0, %s288
      %s310 = sphi 0, %s312
      %s313 = sphi 0, %s310
      %s314 = sphi 0, %s313
      %s330 = sphi 0, %s314
      %s336 = sphi 0, %s338
      %s339 = sphi 0, %s336
      %s340 = sphi 0, %s339
      %s356 = sphi 0, %s340
      %s362 = sphi 0, %s364
      %s365 = sphi 0, %s362
      %s366 = sphi 0, %s365
      %s382 = sphi 0, %s366
      %s388 = sphi 0, %s390
      %s391 = sphi 0, %s388
      %s392 = sphi 0, %s391
      %s408 = sphi 0, %s392
    $region4: #{conv_block_forward.3} parent=1 // loop_header_branch
      %31 = sbr.rel (%p29) target = $region8
    $region5: #{conv_block_forward.3} parent=1 // loop_body
      %s33 = ssub.s32 %s28, 1
      %s34 = ssub.s32 %s28, 2
      %s41 = sadd.s32 1, %s36
      %p42 = scmp.ge.s32.totalorder %s41, 2
      %s43 = scalar_select %p42, 0, %s41
      %s44 = sadd.s32 1, %s35
      %s45 = scalar_select %p42, %s44, %s35
      %p46 = scmp.ge.s32.totalorder %s45, 2
      %s47 = scalar_select %p46, 0, %s45
      %s48 = ssub.s32 %s35, %s47
      %p49 = scmp.eq.s32.totalorder %s48, 0
      %s51 = sadd.s32 %s50, 1
      %s52 = scalar_select %p49, %s50, %s51
      %p55 = pneg %p49
      %p56 = scmp.eq.s32.totalorder %s28, 3
      %p57 = por %p55, %p56
      %p58 = scmp.ne.s32.totalorder %s50, %s53
      %p59 = scmp.eq.s32.totalorder %s28, 0
      %p60 = por %p58, %p59
      %p61 = scmp.ne.s32.totalorder %s50, %s53
      %p62 = scmp.eq.s32.totalorder %s33, 3
      %p63 = por %p61, %p62
      %p64 = scmp.ne.s32.totalorder %s53, %s54
      %p65 = scmp.eq.s32.totalorder %s33, 0
      %p66 = por %p64, %p65
      %p67 = scmp.ne.s32.totalorder %s53, %s54
      %p68 = scmp.eq.s32.totalorder %s34, 3
      %p69 = por %p67, %p68
      %p71 = scmp.ne.s32.totalorder %s54, %s70
      %p72 = scmp.eq.s32.totalorder %s34, 0
      %p73 = por %p71, %p72
      %s74 = ssub.s32 %s36, %s43
      %p75 = scmp.eq.s32.totalorder %s74, 0
      %s77 = sadd.s32 %s76, 1
      %s78 = scalar_select %p75, %s76, %s77
      %p81 = pneg %p75
      %p82 = scmp.eq.s32.totalorder %s28, 3
      %p83 = por %p81, %p82
      %p84 = scmp.ne.s32.totalorder %s76, %s79
      %p85 = scmp.eq.s32.totalorder %s28, 0
      %p86 = por %p84, %p85
      %p87 = scmp.ne.s32.totalorder %s76, %s79
      %p88 = scmp.eq.s32.totalorder %s33, 3
      %p89 = por %p87, %p88
      %p90 = scmp.ne.s32.totalorder %s79, %s80
      %p91 = scmp.eq.s32.totalorder %s33, 0
      %p92 = por %p90, %p91
      %p93 = scmp.ne.s32.totalorder %s79, %s80
      %p94 = scmp.eq.s32.totalorder %s34, 3
      %p95 = por %p93, %p94
      %p97 = scmp.ne.s32.totalorder %s80, %s96
      %p98 = scmp.eq.s32.totalorder %s34, 0
      %p99 = por %p97, %p98
      %s100 = ssub.s32 %s36, %s43
      %p101 = scmp.eq.s32.totalorder %s100, 0
      %s103 = sadd.s32 %s102, 1
      %s104 = scalar_select %p101, %s102, %s103
      %p107 = pneg %p101
      %p108 = scmp.eq.s32.totalorder %s28, 3
      %p109 = por %p107, %p108
      %p110 = scmp.ne.s32.totalorder %s102, %s105
      %p111 = scmp.eq.s32.totalorder %s28, 0
      %p112 = por %p110, %p111
      %p113 = scmp.ne.s32.totalorder %s102, %s105
      %p114 = scmp.eq.s32.totalorder %s33, 3
      %p115 = por %p113, %p114
      %p116 = scmp.ne.s32.totalorder %s105, %s106
      %p117 = scmp.eq.s32.totalorder %s33, 0
      %p118 = por %p116, %p117
      %p119 = scmp.ne.s32.totalorder %s105, %s106
      %p120 = scmp.eq.s32.totalorder %s34, 3
      %p121 = por %p119, %p120
      %p123 = scmp.ne.s32.totalorder %s106, %s122
      %p124 = scmp.eq.s32.totalorder %s34, 0
      %p125 = por %p123, %p124
      %s126 = ssub.s32 %s36, %s43
      %p127 = scmp.eq.s32.totalorder %s126, 0
      %s129 = sadd.s32 %s128, 1
      %s130 = scalar_select %p127, %s128, %s129
      %p133 = pneg %p127
      %p134 = scmp.eq.s32.totalorder %s28, 3
      %p135 = por %p133, %p134
      %p136 = scmp.ne.s32.totalorder %s128, %s131
      %p137 = scmp.eq.s32.totalorder %s28, 0
      %p138 = por %p136, %p137
      %p139 = scmp.ne.s32.totalorder %s128, %s131
      %p140 = scmp.eq.s32.totalorder %s33, 3
      %p141 = por %p139, %p140
      %p142 = scmp.ne.s32.totalorder %s131, %s132
      %p143 = scmp.eq.s32.totalorder %s33, 0
      %p144 = por %p142, %p143
      %p145 = scmp.ne.s32.totalorder %s131, %s132
      %p146 = scmp.eq.s32.totalorder %s34, 3
      %p147 = por %p145, %p146
      %p149 = scmp.ne.s32.totalorder %s132, %s148
      %p150 = scmp.eq.s32.totalorder %s34, 0
      %p151 = por %p149, %p150
      %s152 = ssub.s32 %s36, %s43
      %p153 = scmp.eq.s32.totalorder %s152, 0
      %s155 = sadd.s32 %s154, 1
      %s156 = scalar_select %p153, %s154, %s155
      %p159 = pneg %p153
      %p160 = scmp.eq.s32.totalorder %s28, 3
      %p161 = por %p159, %p160
      %p162 = scmp.ne.s32.totalorder %s154, %s157
      %p163 = scmp.eq.s32.totalorder %s28, 0
      %p164 = por %p162, %p163
      %p165 = scmp.ne.s32.totalorder %s154, %s157
      %p166 = scmp.eq.s32.totalorder %s33, 3
      %p167 = por %p165, %p166
      %p168 = scmp.ne.s32.totalorder %s157, %s158
      %p169 = scmp.eq.s32.totalorder %s33, 0
      %p170 = por %p168, %p169
      %p171 = scmp.ne.s32.totalorder %s157, %s158
      %p172 = scmp.eq.s32.totalorder %s34, 3
      %p173 = por %p171, %p172
      %p175 = scmp.ne.s32.totalorder %s158, %s174
      %p176 = scmp.eq.s32.totalorder %s34, 0
      %p177 = por %p175, %p176
      %s178 = ssub.s32 %s36, %s43
      %p179 = scmp.eq.s32.totalorder %s178, 0
      %s181 = sadd.s32 %s180, 1
      %s182 = scalar_select %p179, %s180, %s181
      %p185 = pneg %p179
      %p186 = scmp.eq.s32.totalorder %s28, 3
      %p187 = por %p185, %p186
      %p188 = scmp.ne.s32.totalorder %s180, %s183
      %p189 = scmp.eq.s32.totalorder %s28, 0
      %p190 = por %p188, %p189
      %p191 = scmp.ne.s32.totalorder %s180, %s183
      %p192 = scmp.eq.s32.totalorder %s33, 3
      %p193 = por %p191, %p192
      %p194 = scmp.ne.s32.totalorder %s183, %s184
      %p195 = scmp.eq.s32.totalorder %s33, 0
      %p196 = por %p194, %p195
      %p197 = scmp.ne.s32.totalorder %s183, %s184
      %p198 = scmp.eq.s32.totalorder %s34, 3
      %p199 = por %p197, %p198
      %p201 = scmp.ne.s32.totalorder %s184, %s200
      %p202 = scmp.eq.s32.totalorder %s34, 0
      %p203 = por %p201, %p202
      %s204 = ssub.s32 %s36, %s43
      %p205 = scmp.eq.s32.totalorder %s204, 0
      %s207 = sadd.s32 %s206, 1
      %s208 = scalar_select %p205, %s206, %s207
      %p211 = pneg %p205
      %p212 = scmp.eq.s32.totalorder %s28, 3
      %p213 = por %p211, %p212
      %p214 = scmp.ne.s32.totalorder %s206, %s209
      %p215 = scmp.eq.s32.totalorder %s28, 0
      %p216 = por %p214, %p215
      %p217 = scmp.ne.s32.totalorder %s206, %s209
      %p218 = scmp.eq.s32.totalorder %s33, 3
      %p219 = por %p217, %p218
      %p220 = scmp.ne.s32.totalorder %s209, %s210
      %p221 = scmp.eq.s32.totalorder %s33, 0
      %p222 = por %p220, %p221
      %p223 = scmp.ne.s32.totalorder %s209, %s210
      %p224 = scmp.eq.s32.totalorder %s34, 3
      %p225 = por %p223, %p224
      %p227 = scmp.ne.s32.totalorder %s210, %s226
      %p228 = scmp.eq.s32.totalorder %s34, 0
      %p229 = por %p227, %p228
      %s230 = ssub.s32 %s36, %s43
      %p231 = scmp.eq.s32.totalorder %s230, 0
      %s233 = sadd.s32 %s232, 1
      %s234 = scalar_select %p231, %s232, %s233
      %p237 = pneg %p231
      %p238 = scmp.eq.s32.totalorder %s28, 3
      %p239 = por %p237, %p238
      %p240 = scmp.ne.s32.totalorder %s232, %s235
      %p241 = scmp.eq.s32.totalorder %s28, 0
      %p242 = por %p240, %p241
      %p243 = scmp.ne.s32.totalorder %s232, %s235
      %p244 = scmp.eq.s32.totalorder %s33, 3
      %p245 = por %p243, %p244
      %p246 = scmp.ne.s32.totalorder %s235, %s236
      %p247 = scmp.eq.s32.totalorder %s33, 0
      %p248 = por %p246, %p247
      %p249 = scmp.ne.s32.totalorder %s235, %s236
      %p250 = scmp.eq.s32.totalorder %s34, 3
      %p251 = por %p249, %p250
      %p253 = scmp.ne.s32.totalorder %s236, %s252
      %p254 = scmp.eq.s32.totalorder %s34, 0
      %p255 = por %p253, %p254
      %s256 = ssub.s32 %s36, %s43
      %p257 = scmp.eq.s32.totalorder %s256, 0
      %s259 = sadd.s32 %s258, 1
      %s260 = scalar_select %p257, %s258, %s259
      %p263 = pneg %p257
      %p264 = scmp.eq.s32.totalorder %s28, 3
      %p265 = por %p263, %p264
      %p266 = scmp.ne.s32.totalorder %s258, %s261
      %p267 = scmp.eq.s32.totalorder %s28, 0
      %p268 = por %p266, %p267
      %p269 = scmp.ne.s32.totalorder %s258, %s261
      %p270 = scmp.eq.s32.totalorder %s33, 3
      %p271 = por %p269, %p270
      %p272 = scmp.ne.s32.totalorder %s261, %s262
      %p273 = scmp.eq.s32.totalorder %s33, 0
      %p274 = por %p272, %p273
      %p275 = scmp.ne.s32.totalorder %s261, %s262
      %p276 = scmp.eq.s32.totalorder %s34, 3
      %p277 = por %p275, %p276
      %p279 = scmp.ne.s32.totalorder %s262, %s278
      %p280 = scmp.eq.s32.totalorder %s34, 0
      %p281 = por %p279, %p280
      %s282 = ssub.s32 %s36, %s43
      %p283 = scmp.eq.s32.totalorder %s282, 0
      %s285 = sadd.s32 %s284, 1
      %s286 = scalar_select %p283, %s284, %s285
      %p289 = pneg %p283
      %p290 = scmp.eq.s32.totalorder %s28, 3
      %p291 = por %p289, %p290
      %p292 = scmp.ne.s32.totalorder %s284, %s287
      %p293 = scmp.eq.s32.totalorder %s28, 0
      %p294 = por %p292, %p293
      %p295 = scmp.ne.s32.totalorder %s284, %s287
      %p296 = scmp.eq.s32.totalorder %s33, 3
      %p297 = por %p295, %p296
      %p298 = scmp.ne.s32.totalorder %s287, %s288
      %p299 = scmp.eq.s32.totalorder %s33, 0
      %p300 = por %p298, %p299
      %p301 = scmp.ne.s32.totalorder %s287, %s288
      %p302 = scmp.eq.s32.totalorder %s34, 3
      %p303 = por %p301, %p302
      %p305 = scmp.ne.s32.totalorder %s288, %s304
      %p306 = scmp.eq.s32.totalorder %s34, 0
      %p307 = por %p305, %p306
      %s308 = ssub.s32 %s36, %s43
      %p309 = scmp.eq.s32.totalorder %s308, 0
      %s311 = sadd.s32 %s310, 1
      %s312 = scalar_select %p309, %s310, %s311
      %p315 = pneg %p309
      %p316 = scmp.eq.s32.totalorder %s28, 3
      %p317 = por %p315, %p316
      %p318 = scmp.ne.s32.totalorder %s310, %s313
      %p319 = scmp.eq.s32.totalorder %s28, 0
      %p320 = por %p318, %p319
      %p321 = scmp.ne.s32.totalorder %s310, %s313
      %p322 = scmp.eq.s32.totalorder %s33, 3
      %p323 = por %p321, %p322
      %p324 = scmp.ne.s32.totalorder %s313, %s314
      %p325 = scmp.eq.s32.totalorder %s33, 0
      %p326 = por %p324, %p325
      %p327 = scmp.ne.s32.totalorder %s313, %s314
      %p328 = scmp.eq.s32.totalorder %s34, 3
      %p329 = por %p327, %p328
      %p331 = scmp.ne.s32.totalorder %s314, %s330
      %p332 = scmp.eq.s32.totalorder %s34, 0
      %p333 = por %p331, %p332
      %s334 = ssub.s32 %s36, %s43
      %p335 = scmp.eq.s32.totalorder %s334, 0
      %s337 = sadd.s32 %s336, 1
      %s338 = scalar_select %p335, %s336, %s337
      %p341 = pneg %p335
      %p342 = scmp.eq.s32.totalorder %s28, 3
      %p343 = por %p341, %p342
      %p344 = scmp.ne.s32.totalorder %s336, %s339
      %p345 = scmp.eq.s32.totalorder %s28, 0
      %p346 = por %p344, %p345
      %p347 = scmp.ne.s32.totalorder %s336, %s339
      %p348 = scmp.eq.s32.totalorder %s33, 3
      %p349 = por %p347, %p348
      %p350 = scmp.ne.s32.totalorder %s339, %s340
      %p351 = scmp.eq.s32.totalorder %s33, 0
      %p352 = por %p350, %p351
      %p353 = scmp.ne.s32.totalorder %s339, %s340
      %p354 = scmp.eq.s32.totalorder %s34, 3
      %p355 = por %p353, %p354
      %p357 = scmp.ne.s32.totalorder %s340, %s356
      %p358 = scmp.eq.s32.totalorder %s34, 0
      %p359 = por %p357, %p358
      %s360 = ssub.s32 %s36, %s43
      %p361 = scmp.eq.s32.totalorder %s360, 0
      %s363 = sadd.s32 %s362, 1
      %s364 = scalar_select %p361, %s362, %s363
      %p367 = pneg %p361
      %p368 = scmp.eq.s32.totalorder %s28, 3
      %p369 = por %p367, %p368
      %p370 = scmp.ne.s32.totalorder %s362, %s365
      %p371 = scmp.eq.s32.totalorder %s28, 0
      %p372 = por %p370, %p371
      %p373 = scmp.ne.s32.totalorder %s362, %s365
      %p374 = scmp.eq.s32.totalorder %s33, 3
      %p375 = por %p373, %p374
      %p376 = scmp.ne.s32.totalorder %s365, %s366
      %p377 = scmp.eq.s32.totalorder %s33, 0
      %p378 = por %p376, %p377
      %p379 = scmp.ne.s32.totalorder %s365, %s366
      %p380 = scmp.eq.s32.totalorder %s34, 3
      %p381 = por %p379, %p380
      %p383 = scmp.ne.s32.totalorder %s366, %s382
      %p384 = scmp.eq.s32.totalorder %s34, 0
      %p385 = por %p383, %p384
      %s386 = ssub.s32 %s35, %s47
      %p387 = scmp.eq.s32.totalorder %s386, 0
      %s389 = sadd.s32 %s388, 1
      %s390 = scalar_select %p387, %s388, %s389
      %p393 = pneg %p387
      %p394 = scmp.eq.s32.totalorder %s28, 3
      %p395 = por %p393, %p394
      %p396 = scmp.ne.s32.totalorder %s388, %s391
      %p397 = scmp.eq.s32.totalorder %s28, 0
      %p398 = por %p396, %p397
      %p399 = scmp.ne.s32.totalorder %s388, %s391
      %p400 = scmp.eq.s32.totalorder %s33, 3
      %p401 = por %p399, %p400
      %p402 = scmp.ne.s32.totalorder %s391, %s392
      %p403 = scmp.eq.s32.totalorder %s33, 0
      %p404 = por %p402, %p403
      %p405 = scmp.ne.s32.totalorder %s391, %s392
      %p406 = scmp.eq.s32.totalorder %s34, 3
      %p407 = por %p405, %p406
      %p409 = scmp.ne.s32.totalorder %s392, %s408
      %p410 = scmp.eq.s32.totalorder %s34, 0
      %p411 = por %p409, %p410
      %p412 = scmp.le.s32.totalorder 1, %s28
      %p413 = scmp.lt.s32.totalorder %s28, 5
      %p414 = pnand %p412, %p413
      %p415 = pneg %p414
      // Predicated region
      $region9: #{conv_block_forward.3} parent=5 // pred_check
        _
      $region10: #{conv_block_forward.3} parent=5 // pred_check_branch
        %417 = sbr.rel (%p414) target = $region12
      $region11: #{conv_block_forward.3} parent=5 // pred_region
        %s418 = ssub.s32 %s28, 1
      $region12: #{conv_block_forward.3} parent=5 // pred_fallthru
        _
      %p419 = scmp.lt.s32.totalorder %s28, 4
      // Predicated region
      $region13: #{conv_block_forward.3} parent=5 // pred_check
        %p420 = pneg %p419
      $region14: #{conv_block_forward.3} parent=5 // pred_check_branch
        %422 = sbr.rel (%p420) target = $region16
      $region15: #{conv_block_forward.3} parent=5 // pred_region
        // Predicated region
        $region17: #{conv_block_forward.3} parent=15 // pred_check
          %p423 = pneg %p60
        $region18: #{conv_block_forward.3} parent=15 // pred_check_branch
          %425 = sbr.rel (%p423) target = $region20
        $region19: #{conv_block_forward.3} parent=15 // pred_region
          %p426 = scmp.lt.s32.totalorder %s35, 1
          %s427 = scalar_select %p426, %s35, 1
          %s428 = smul.addr %s427, 8
          %s429 = scalar_lea.vmem %s0, %s428
        $region20: #{conv_block_forward.3} parent=15 // pred_fallthru
          _
        // Predicated region
        $region21: #{conv_block_forward.3} parent=15 // pred_check
          %p430 = pneg %p86
        $region22: #{conv_block_forward.3} parent=15 // pred_check_branch
          %432 = sbr.rel (%p430) target = $region24
        $region23: #{conv_block_forward.3} parent=15 // pred_region
          %s433 = sand.u32 %s76, 1
          %s434 = scalar_lea.sflag [#allocation8], %s433
          %s435 = sand.u32 %s76, 1
          %s436 = scalar_lea.vmem [#allocation7], %s435
          %438 = vsyncadd %s434, 0
          %s439 = scalar_lea.hbm %s1, %s36
          %s441 = sshll.u32 %s439, 4
          %s442 = int_to_ptr.hbm [resolvable:$true] %s441
          %s443 = sshll.u32 %s436, 4
          %s444 = int_to_ptr.vmem [resolvable:$true] %s443
          %446 = dma.hbm_to_vmem [thread:$0]  %s442, 16, %s444, %s434
        $region24: #{conv_block_forward.3} parent=15 // pred_fallthru
          _
        // Predicated region
        $region25: #{conv_block_forward.3} parent=15 // pred_check
          %p447 = pneg %p112
        $region26: #{conv_block_forward.3} parent=15 // pred_check_branch
          %449 = sbr.rel (%p447) target = $region28
        $region27: #{conv_block_forward.3} parent=15 // pred_region
          %s450 = sand.u32 %s28, 1
          %s451 = scalar_lea.sflag [#allocation10], %s450
          %s452 = sand.u32 %s102, 1
          %s453 = scalar_lea.vmem [#allocation9], %s452
          %455 = vsyncadd %s451, 0
          %s456 = scalar_lea.hbm %s2, %s36
          %s458 = sshll.u32 %s456, 4
          %s459 = int_to_ptr.hbm [resolvable:$true] %s458
          %s460 = sshll.u32 %s453, 4
          %s461 = int_to_ptr.vmem [resolvable:$true] %s460
          %463 = dma.hbm_to_vmem [thread:$0]  %s459, 16, %s461, %s451
        $region28: #{conv_block_forward.3} parent=15 // pred_fallthru
          _
        // Predicated region
        $region29: #{conv_block_forward.3} parent=15 // pred_check
          %p464 = pneg %p138
        $region30: #{conv_block_forward.3} parent=15 // pred_check_branch
          %466 = sbr.rel (%p464) target = $region32
        $region31: #{conv_block_forward.3} parent=15 // pred_region
          %s467 = sand.u32 %s28, 1
          %s468 = scalar_lea.sflag [#allocation10], %s467
          %s469 = sand.u32 %s128, 1
          %s470 = smul.addr %s469, 4
          %s471 = scalar_lea.vmem [#allocation11], %s470
          %473 = vsyncadd %s468, 0
          %s474 = smul.addr %s36, 4
          %s475 = scalar_lea.hbm %s3, %s474
          %s477 = sshll.u32 %s475, 4
          %s478 = int_to_ptr.hbm [resolvable:$true] %s477
          %s479 = sshll.u32 %s471, 4
          %s480 = int_to_ptr.vmem [resolvable:$true] %s479
          %482 = dma.hbm_to_vmem [thread:$0]  %s478, 64, %s480, %s468
        $region32: #{conv_block_forward.3} parent=15 // pred_fallthru
          _
        // Predicated region
        $region33: #{conv_block_forward.3} parent=15 // pred_check
          %p483 = pneg %p164
        $region34: #{conv_block_forward.3} parent=15 // pred_check_branch
          %485 = sbr.rel (%p483) target = $region36
        $region35: #{conv_block_forward.3} parent=15 // pred_region
          %s486 = sand.u32 %s28, 1
          %s487 = scalar_lea.sflag [#allocation13], %s486
          %s488 = sand.u32 %s154, 1
          %s489 = smul.addr %s488, 4
          %s490 = scalar_lea.vmem [#allocation12], %s489
          %492 = vsyncadd %s487, 0
          %s493 = smul.addr %s36, 4
          %s494 = scalar_lea.hbm %s4, %s493
          %s496 = sshll.u32 %s494, 4
          %s497 = int_to_ptr.hbm [resolvable:$true] %s496
          %s498 = sshll.u32 %s490, 4
          %s499 = int_to_ptr.vmem [resolvable:$true] %s498
          %501 = dma.hbm_to_vmem [thread:$0]  %s497, 64, %s499, %s487
        $region36: #{conv_block_forward.3} parent=15 // pred_fallthru
          _
        // Predicated region
        $region37: #{conv_block_forward.3} parent=15 // pred_check
          %p502 = pneg %p190
        $region38: #{conv_block_forward.3} parent=15 // pred_check_branch
          %504 = sbr.rel (%p502) target = $region40
        $region39: #{conv_block_forward.3} parent=15 // pred_region
          %p505 = scmp.lt.s32.totalorder %s36, 1
          %s506 = scalar_select %p505, %s36, 1
          %s507 = smul.addr %s506, 4
          %s508 = scalar_lea.vmem %s5, %s507
        $region40: #{conv_block_forward.3} parent=15 // pred_fallthru
          _
        // Predicated region
        $region41: #{conv_block_forward.3} parent=15 // pred_check
          %p509 = pneg %p216
        $region42: #{conv_block_forward.3} parent=15 // pred_check_branch
          %511 = sbr.rel (%p509) target = $region44
        $region43: #{conv_block_forward.3} parent=15 // pred_region
          %p512 = scmp.lt.s32.totalorder %s36, 1
          %s513 = scalar_select %p512, %s36, 1
          %s514 = scalar_lea.vmem %s6, %s513
        $region44: #{conv_block_forward.3} parent=15 // pred_fallthru
          _
        // Predicated region
        $region45: #{conv_block_forward.3} parent=15 // pred_check
          %p515 = pneg %p242
        $region46: #{conv_block_forward.3} parent=15 // pred_check_branch
          %517 = sbr.rel (%p515) target = $region48
        $region47: #{conv_block_forward.3} parent=15 // pred_region
          %p518 = scmp.lt.s32.totalorder %s36, 1
          %s519 = scalar_select %p518, %s36, 1
          %s520 = smul.addr %s519, 2
          %s521 = smul.addr %s520, 4
          %s522 = scalar_lea.vmem %s7, %s521
        $region48: #{conv_block_forward.3} parent=15 // pred_fallthru
          _
        // Predicated region
        $region49: #{conv_block_forward.3} parent=15 // pred_check
          %p523 = pneg %p268
        $region50: #{conv_block_forward.3} parent=15 // pred_check_branch
          %525 = sbr.rel (%p523) target = $region52
        $region51: #{conv_block_forward.3} parent=15 // pred_region
          %s526 = sand.u32 %s28, 1
          %s527 = scalar_lea.sflag [#allocation13], %s526
          %s528 = sand.u32 %s258, 1
          %s529 = scalar_lea.vmem [#allocation14], %s528
          %531 = vsyncadd %s527, 0
          %s532 = scalar_lea.hbm %s8, %s36
          %s534 = sshll.u32 %s532, 4
          %s535 = int_to_ptr.hbm [resolvable:$true] %s534
          %s536 = sshll.u32 %s529, 4
          %s537 = int_to_ptr.vmem [resolvable:$true] %s536
          %539 = dma.hbm_to_vmem [thread:$0]  %s535, 16, %s537, %s527
        $region52: #{conv_block_forward.3} parent=15 // pred_fallthru
          _
        // Predicated region
        $region53: #{conv_block_forward.3} parent=15 // pred_check
          %p540 = pneg %p294
        $region54: #{conv_block_forward.3} parent=15 // pred_check_branch
          %542 = sbr.rel (%p540) target = $region56
        $region55: #{conv_block_forward.3} parent=15 // pred_region
          %p543 = scmp.lt.s32.totalorder %s36, 1
          %s544 = scalar_select %p543, %s36, 1
          %s545 = smul.addr %s544, 2
          %s546 = smul.addr %s545, 4
          %s547 = scalar_lea.vmem %s9, %s546
        $region56: #{conv_block_forward.3} parent=15 // pred_fallthru
          _
        // Predicated region
        $region57: #{conv_block_forward.3} parent=15 // pred_check
          %p548 = pneg %p320
        $region58: #{conv_block_forward.3} parent=15 // pred_check_branch
          %550 = sbr.rel (%p548) target = $region60
        $region59: #{conv_block_forward.3} parent=15 // pred_region
          %p551 = scmp.lt.s32.totalorder %s36, 1
          %s552 = scalar_select %p551, %s36, 1
          %s553 = smul.addr %s552, 8
          %s554 = scalar_lea.vmem %s10, %s553
        $region60: #{conv_block_forward.3} parent=15 // pred_fallthru
          _
        // Predicated region
        $region61: #{conv_block_forward.3} parent=15 // pred_check
          %p555 = pneg %p346
        $region62: #{conv_block_forward.3} parent=15 // pred_check_branch
          %557 = sbr.rel (%p555) target = $region64
        $region63: #{conv_block_forward.3} parent=15 // pred_region
          %p558 = scmp.lt.s32.totalorder %s36, 1
          %s559 = scalar_select %p558, %s36, 1
          %s560 = scalar_lea.vmem %s11, %s559
        $region64: #{conv_block_forward.3} parent=15 // pred_fallthru
          _
        // Predicated region
        $region65: #{conv_block_forward.3} parent=15 // pred_check
          %p561 = pneg %p372
        $region66: #{conv_block_forward.3} parent=15 // pred_check_branch
          %563 = sbr.rel (%p561) target = $region68
        $region67: #{conv_block_forward.3} parent=15 // pred_region
          %p564 = scmp.lt.s32.totalorder %s36, 1
          %s565 = scalar_select %p564, %s36, 1
          %s566 = smul.addr %s565, 2
          %s567 = smul.addr %s566, 4
          %s568 = scalar_lea.vmem %s12, %s567
        $region68: #{conv_block_forward.3} parent=15 // pred_fallthru
          _
      $region16: #{conv_block_forward.3} parent=5 // pred_fallthru
        _
      %p569 = scmp.le.s32.totalorder 1, %s28
      %p570 = scmp.lt.s32.totalorder %s28, 5
      %p571 = pnand %p569, %p570
      %p572 = pneg %p571
      // Predicated region
      $region69: #{conv_block_forward.3} parent=5 // pred_check
        _
      $region70: #{conv_block_forward.3} parent=5 // pred_check_branch
        %574 = sbr.rel (%p571) target = $region72
      $region71: #{conv_block_forward.3} parent=5 // pred_region
        %s575 = ssub.s32 %s28, 1
        %s576 = sand.u32 %s79, 1
        %s577 = scalar_lea.sflag [#allocation8], %s576
        %s578 = sand.u32 %s79, 1
        %s579 = scalar_lea.vmem [#allocation7], %s578
        // Predicated region
        $region73: #{conv_block_forward.3} parent=71 // pred_check
          %p580 = pneg %p92
        $region74: #{conv_block_forward.3} parent=71 // pred_check_branch
          %582 = sbr.rel (%p580) target = $region76
        $region75: #{conv_block_forward.3} parent=71 // pred_region
          %584 = dma.done %s577, 16
        $region76: #{conv_block_forward.3} parent=71 // pred_fallthru
          _
        %s585 = sand.u32 %s33, 1
        %s586 = scalar_lea.sflag [#allocation10], %s585
        %s587 = sand.u32 %s105, 1
        %s588 = scalar_lea.vmem [#allocation9], %s587
        // Predicated region
        $region77: #{conv_block_forward.3} parent=71 // pred_check
          %p589 = pneg %p118
        $region78: #{conv_block_forward.3} parent=71 // pred_check_branch
          %591 = sbr.rel (%p589) target = $region80
        $region79: #{conv_block_forward.3} parent=71 // pred_region
          %593 = dma.done %s586, 16
        $region80: #{conv_block_forward.3} parent=71 // pred_fallthru
          _
        %s594 = sand.u32 %s33, 1
        %s595 = scalar_lea.sflag [#allocation10], %s594
        %s596 = sand.u32 %s131, 1
        %s597 = smul.addr %s596, 4
        %s598 = scalar_lea.vmem [#allocation11], %s597
        // Predicated region
        $region81: #{conv_block_forward.3} parent=71 // pred_check
          %p599 = pneg %p144
        $region82: #{conv_block_forward.3} parent=71 // pred_check_branch
          %601 = sbr.rel (%p599) target = $region84
        $region83: #{conv_block_forward.3} parent=71 // pred_region
          %603 = dma.done %s595, 64
        $region84: #{conv_block_forward.3} parent=71 // pred_fallthru
          _
        %s604 = sand.u32 %s33, 1
        %s605 = scalar_lea.sflag [#allocation13], %s604
        %s606 = sand.u32 %s157, 1
        %s607 = smul.addr %s606, 4
        %s608 = scalar_lea.vmem [#allocation12], %s607
        // Predicated region
        $region85: #{conv_block_forward.3} parent=71 // pred_check
          %p609 = pneg %p170
        $region86: #{conv_block_forward.3} parent=71 // pred_check_branch
          %611 = sbr.rel (%p609) target = $region88
        $region87: #{conv_block_forward.3} parent=71 // pred_region
          %613 = dma.done %s605, 64
        $region88: #{conv_block_forward.3} parent=71 // pred_fallthru
          _
        %s614 = sand.u32 %s33, 1
        %s615 = scalar_lea.sflag [#allocation13], %s614
        %s616 = sand.u32 %s261, 1
        %s617 = scalar_lea.vmem [#allocation14], %s616
        // Predicated region
        $region89: #{conv_block_forward.3} parent=71 // pred_check
          %p618 = pneg %p274
        $region90: #{conv_block_forward.3} parent=71 // pred_check_branch
          %620 = sbr.rel (%p618) target = $region92
        $region91: #{conv_block_forward.3} parent=71 // pred_region
          %622 = dma.done %s615, 16
        $region92: #{conv_block_forward.3} parent=71 // pred_fallthru
          _
        %p623 = scmp.lt.s32.totalorder %s37, 1
        %s624 = scalar_select %p623, %s37, 1
        %s625 = smul.addr %s624, 8
        %s626 = scalar_lea.vmem %s0, %s625
        %p627 = pneg %p66
        %p628 = pneg %p63
        %s629 = sand.u32 %s79, 1
        %s630 = scalar_lea.sflag [#allocation8], %s629
        %s631 = sand.u32 %s79, 1
        %s632 = scalar_lea.vmem [#allocation7], %s631
        %p633 = pneg %p92
        %p634 = pneg %p89
        %s635 = sand.u32 %s33, 1
        %s636 = scalar_lea.sflag [#allocation10], %s635
        %s637 = sand.u32 %s105, 1
        %s638 = scalar_lea.vmem [#allocation9], %s637
        %p639 = pneg %p118
        %p640 = pneg %p115
        %s641 = sand.u32 %s33, 1
        %s642 = scalar_lea.sflag [#allocation10], %s641
        %s643 = sand.u32 %s131, 1
        %s644 = smul.addr %s643, 4
        %s645 = scalar_lea.vmem [#allocation11], %s644
        %p646 = pneg %p144
        %p647 = pneg %p141
        %s648 = sand.u32 %s33, 1
        %s649 = scalar_lea.sflag [#allocation13], %s648
        %s650 = sand.u32 %s157, 1
        %s651 = smul.addr %s650, 4
        %s652 = scalar_lea.vmem [#allocation12], %s651
        %p653 = pneg %p170
        %p654 = pneg %p167
        %p655 = scmp.lt.s32.totalorder %s38, 1
        %s656 = scalar_select %p655, %s38, 1
        %s657 = smul.addr %s656, 4
        %s658 = scalar_lea.vmem %s5, %s657
        %p659 = pneg %p196
        %p660 = pneg %p193
        %p661 = scmp.lt.s32.totalorder %s38, 1
        %s662 = scalar_select %p661, %s38, 1
        %s663 = scalar_lea.vmem %s6, %s662
        %p664 = pneg %p222
        %p665 = pneg %p219
        %p666 = scmp.lt.s32.totalorder %s38, 1
        %s667 = scalar_select %p666, %s38, 1
        %s668 = smul.addr %s667, 2
        %s669 = smul.addr %s668, 4
        %s670 = scalar_lea.vmem %s7, %s669
        %p671 = pneg %p248
        %p672 = pneg %p245
        %s673 = sand.u32 %s33, 1
        %s674 = scalar_lea.sflag [#allocation13], %s673
        %s675 = sand.u32 %s261, 1
        %s676 = scalar_lea.vmem [#allocation14], %s675
        %p677 = pneg %p274
        %p678 = pneg %p271
        %p679 = scmp.lt.s32.totalorder %s38, 1
        %s680 = scalar_select %p679, %s38, 1
        %s681 = smul.addr %s680, 2
        %s682 = smul.addr %s681, 4
        %s683 = scalar_lea.vmem %s9, %s682
        %p684 = pneg %p300
        %p685 = pneg %p297
        %p686 = scmp.lt.s32.totalorder %s38, 1
        %s687 = scalar_select %p686, %s38, 1
        %s688 = smul.addr %s687, 8
        %s689 = scalar_lea.vmem %s10, %s688
        %p690 = pneg %p326
        %p691 = pneg %p323
        %p692 = scmp.lt.s32.totalorder %s38, 1
        %s693 = scalar_select %p692, %s38, 1
        %s694 = scalar_lea.vmem %s11, %s693
        %p695 = pneg %p352
        %p696 = pneg %p349
        %p697 = scmp.lt.s32.totalorder %s38, 1
        %s698 = scalar_select %p697, %s38, 1
        %s699 = smul.addr %s698, 2
        %s700 = smul.addr %s699, 4
        %s701 = scalar_lea.vmem %s12, %s700
        %p702 = pneg %p378
        %p703 = pneg %p375
        %p704 = pneg %p404
        %p705 = pneg %p401
        %p706 = scmp.lt.s32.totalorder %s37, 1
        %s707 = scalar_select %p706, %s37, 1
        %s708 = smul.addr %s707, 8
        %s709 = scalar_lea.vmem %s13, %s708
        %p710 = scmp.lt.s32.totalorder %s37, 1
        %s711 = scalar_select %p710, %s37, 1
        %s712 = smul.addr %s711, 8
        %s713 = scalar_lea.vmem %s0, %s712
        %p714 = scmp.lt.s32.totalorder %s38, 1
        %s715 = scalar_select %p714, %s38, 1
        %s716 = smul.addr %s715, 4
        %s717 = scalar_lea.vmem %s5, %s716
        %p718 = scmp.lt.s32.totalorder %s38, 1
        %s719 = scalar_select %p718, %s38, 1
        %s720 = scalar_lea.vmem %s6, %s719
        %p721 = scmp.lt.s32.totalorder %s38, 1
        %s722 = scalar_select %p721, %s38, 1
        %s723 = smul.addr %s722, 2
        %s724 = smul.addr %s723, 4
        %s725 = scalar_lea.vmem %s7, %s724
        %p726 = scmp.lt.s32.totalorder %s38, 1
        %s727 = scalar_select %p726, %s38, 1
        %s728 = smul.addr %s727, 2
        %s729 = smul.addr %s728, 4
        %s730 = scalar_lea.vmem %s9, %s729
        %p731 = scmp.lt.s32.totalorder %s38, 1
        %s732 = scalar_select %p731, %s38, 1
        %s733 = smul.addr %s732, 8
        %s734 = scalar_lea.vmem %s10, %s733
        %p735 = scmp.lt.s32.totalorder %s38, 1
        %s736 = scalar_select %p735, %s38, 1
        %s737 = scalar_lea.vmem %s11, %s736
        %p738 = scmp.lt.s32.totalorder %s38, 1
        %s739 = scalar_select %p738, %s38, 1
        %s740 = smul.addr %s739, 2
        %s741 = smul.addr %s740, 4
        %s742 = scalar_lea.vmem %s12, %s741
        %p743 = scmp.lt.s32.totalorder %s37, 1
        %s744 = scalar_select %p743, %s37, 1
        %s745 = smul.addr %s744, 8
        %s746 = scalar_lea.vmem %s13, %s745
        %p748 = scmp.eq.s32.totalorder %s38, 0
        // Predicated region
        $region93: #{conv_block_forward.3} parent=71 // pred_check
          %p749 = pneg %p748
        $region94: #{conv_block_forward.3} parent=71 // pred_check_branch
          %751 = sbr.rel (%p749) target = $region96
        $region95: #{conv_block_forward.3} parent=71 // pred_region
          %v752 = vld [vmem:[%s713] sm:$0xff]
          %vm753 = vcmask 64512
          %754 = vst.msk [vmem:[#allocation2] sm:$0xff] %vm753, %v752
        $region96: #{conv_block_forward.3} parent=71 // pred_fallthru
          _
        %v755 = vld [vmem:[#allocation2] sm:$0xff]
        %v756 = vld [vmem:[%s579] sm:$0x1]
        %v757 = vld [vmem:[%s588] sm:$0x1]
        %vm758 = vcmask 64512
        %v759 = vsel %vm758, %v755, 0.0
        %760 = vadd.xlane.f32.xlu0 %v759
        %v761 = vpop.xlane.xlu0 %760
        %v762 = vrcp.pop 8.0
        %v763 = vmul.f32 8.0, %v762
        %v764 = vsub.f32 1.0, %v763
        %v765 = vmul.f32 %v762, %v764
        %v766 = vadd.f32 %v762, %v765
        %vm767 = vweird.f32 %v762
        %v768 = vsel %vm767, %v762, %v766
        %v769 = vmul.f32 %v761, %v768
        %v770 = vsub.f32 %v755, %v769
        %v771 = vmul.f32 %v770, %v770
        %v772 = vsel %vm758, %v771, 0.0
        %773 = vadd.xlane.f32.xlu0 %v772
        %v774 = vpop.xlane.xlu0 %773
        %v775 = vmul.f32 %v774, %v768
        %v776 = vadd.f32 %v775, 1e-05
        %v777 = vrsqrt.pop %v776
        %v778 = vmul.f32 %v777, %v776
        %v779 = vmul.f32 %v778, %v777
        %v780 = vmul.f32 0.5, %v779
        %v781 = vsub.f32 1.5, %v780
        %v782 = vmul.f32 %v777, %v781
        %vm783 = vweird.f32 %v776
        %vm784 = vweird.f32 %v777
        %vm785 = vmor %vm783, %vm784
        %v786 = vsel %vm785, %v777, %v782
        %v787 = vmul.f32 %v770, %v786
        %v789 = vperm.slane %v756, 0
        %v791 = vmul.f32 %v787, %v789
        %v793 = vperm.slane %v757, 0
        %v795 = vadd.f32 %v791, %v793
        %v796 = vpack.c.bf16 %v795, %v795
        %v797 = vld [vmem:[%s598] sm:$0xf]
        %v799 = vsel %vm758, %v796, 0
        %vm801 = vcmask 1043456
        %v803 = vsel %vm801, %v797, 0
        %805 = vmatpush.bf16.msra.mxu0 0
        %806 = vmatpush.bf16.msra.mxu0 0
        %807 = vmatpush.bf16.msra.mxu0 0
        %808 = vmatpush.bf16.msra.mxu0 0
        %809 = vmatpush.bf16.msra.mxu0 0
        %810 = vmatpush.bf16.msra.mxu0 0
        %811 = vmatpush.bf16.msra.mxu0 0
        %812 = vmatpush.bf16.msra.mxu0 %v803
        %813 = vmatmul.bf16.gmra.mxu0 %v799
        %v814 = vpop.f32.mrf.mxu0
        %v815 = vadd.f32 0.0, %v814
        %v816 = vpop.f32.mrf.mxu0
        %817 = vdwg.mxu0
        %v818 = vld [vmem:[%s608] sm:$0xf]
        %v820 = vsel %vm801, %v818, 0
        %822 = vmatpush.bf16.msra.mxu0 0
        %823 = vmatpush.bf16.msra.mxu0 0
        %824 = vmatpush.bf16.msra.mxu0 0
        %825 = vmatpush.bf16.msra.mxu0 0
        %826 = vmatpush.bf16.msra.mxu0 0
        %827 = vmatpush.bf16.msra.mxu0 0
        %828 = vmatpush.bf16.msra.mxu0 0
        %829 = vmatpush.bf16.msra.mxu0 %v820
        %830 = vmatmul.bf16.gmra.mxu0 %v799
        %v831 = vpop.f32.mrf.mxu0
        %v832 = vadd.f32 0.0, %v831
        %v833 = vpop.f32.mrf.mxu0
        %834 = vdwg.mxu0
        %v835 = vld [vmem:[%s717] sm:$0x7]
        %v836 = vperm.slane %v835, 2
        %v837 = vmul.f32 %v836, %v815
        %v839 = vrot.slane %v815, 7
        %vm841 = vcmask 1040384
        %v842 = vsel %vm841, 0.0, %v839
        %v843 = vperm.slane %v835, 1
        %v844 = vmul.f32 %v843, %v842
        %v845 = vadd.f32 %v837, %v844
        %v846 = vrot.slane %v815, 6
        %vm848 = vcmask 1041408
        %v849 = vsel %vm848, 0.0, %v846
        %v850 = vperm.slane %v835, 0
        %v851 = vmul.f32 %v850, %v849
        %v852 = vadd.f32 %v845, %v851
        %v853 = vld [vmem:[%s720] sm:$0x1]
        %v855 = vperm.slane %v853, 0
        %v857 = vadd.f32 %v852, %v855
        %v858 = vsub.f32 0.0, %v857
        %v859 = vmul.f32 %v858, 1.442695
        %v860 = vpow.pop %v859
        %v861 = vadd.f32 %v860, 1.0
        %v862 = vrcp.pop %v861
        %v863 = vmul.f32 %v861, %v862
        %v864 = vsub.f32 1.0, %v863
        %v865 = vmul.f32 %v862, %v864
        %v866 = vadd.f32 %v862, %v865
        %vm867 = vweird.f32 %v861
        %vm868 = vweird.f32 %v862
        %vm869 = vmor %vm867, %vm868
        %v870 = vsel %vm869, %v862, %v866
        %v871 = vand.u32 2147483647, %v861
        %vm872 = vcmp.eq.f32.partialorder %v871, 8.507059e+37
        %v873 = vand.u32 %v861, 2147483648
        %v874 = vor.u32 1.1754944e-38, %v873
        %v875 = vsel %vm872, %v874, %v870
        %v876 = vmul.f32 1.0, %v875
        %v877 = vmul.f32 %v857, %v876
        %v878 = vpack.c.bf16 %v877, %v877
        %v879 = vld [vmem:[%s725] sm:$0xf]
        %v880 = vld [vmem:[%s725 + $0x4] sm:$0xf]
        %v881 = vld [vmem:[%s617] sm:$0x1]
        %v883 = vperm.slane %v881, 0
        %v887 = vunpack.c.l.b16 %v879
        %v888 = vunpack.c.l.b16 %v880
        %v889 = vpack.c.b16 %v888, %v887
        %vm891 = vcmask 130048
        %v893 = vsel %vm891, %v878, 0
        %895 = vmatpush.bf16.msra.mxu0 0
        %896 = vmatpush.bf16.msra.mxu0 0
        %897 = vmatpush.bf16.msra.mxu0 0
        %898 = vmatpush.bf16.msra.mxu0 0
        %899 = vmatpush.bf16.msra.mxu0 0
        %900 = vmatpush.bf16.msra.mxu0 0
        %901 = vmatpush.bf16.msra.mxu0 0
        %902 = vmatpush.bf16.msra.mxu0 %v889
        %903 = vmatmul.bf16.gmra.mxu0 %v893
        %v904 = vpop.f32.mrf.mxu0
        %v905 = vadd.f32 %v883, %v904
        %v906 = vpop.f32.mrf.mxu0
        %907 = vdwg.mxu0
        %v908 = vmax.f32 %v905, 0.0
        %v909 = vand.u32 2147483647, %v905
        %v910 = vsub.f32 0.0, %v909
        %v911 = vmul.f32 %v910, 1.442695
        %v912 = vpow.pop %v911
        %v913 = vadd.f32 %v912, 1.0
        %v914 = vlog2.pop %v913
        %v915 = vmul.f32 %v914, 0.6931472
        %v916 = vadd.f32 %v908, %v915
        %917 = vst.msk [vmem:[#allocation3] sm:$0xff] %vm891, %v916
        %v918 = vmul.f32 %v916, %v877
        %919 = vst.msk [vmem:[#allocation4] sm:$0xff] %vm891, %v918
        %v920 = vld [vmem:[%s730] sm:$0xf]
        %v921 = vld [vmem:[%s730 + $0x4] sm:$0xf]
        %v924 = vunpack.c.l.b16 %v920
        %v925 = vunpack.c.l.b16 %v921
        %v926 = vpack.c.b16 %v925, %v924
        %928 = vmatpush.bf16.msra.mxu0 0
        %929 = vmatpush.bf16.msra.mxu0 0
        %930 = vmatpush.bf16.msra.mxu0 0
        %931 = vmatpush.bf16.msra.mxu0 0
        %932 = vmatpush.bf16.msra.mxu0 0
        %933 = vmatpush.bf16.msra.mxu0 0
        %934 = vmatpush.bf16.msra.mxu0 0
        %935 = vmatpush.bf16.msra.mxu0 %v926
        %936 = vmatmul.bf16.gmra.mxu0 %v893
        %v937 = vpop.f32.mrf.mxu0
        %v938 = vadd.f32 0.0, %v937
        %v939 = vpop.f32.mrf.mxu0
        %940 = vdwg.mxu0
        %941 = vst.msk [vmem:[#allocation5] sm:$0xff] %vm891, %v938
        %v942 = vld [vmem:[%s734] sm:$0xff]
        %v943 = vlaneseq
        %v944 = vshrl.u32 %v943, 7
        %v945 = vlaneseq
        %v946 = vand.u32 %v945, 127
        %vm947 = vcmp.eq.s32.totalorder %v946, %v944
        %v948 = vsel %vm947, 1, 0
        %v949 = vcvt.s32.f32 %v948
        %v950 = vadd.s32 %v944, 8
        %vm951 = vcmp.eq.s32.totalorder %v946, %v950
        %v952 = vsel %vm951, 1, 0
        %v953 = vcvt.s32.f32 %v952
        %v954 = vld [vmem:[#allocation3] sm:$0xff]
        %v955 = vld [vmem:[#allocation4] sm:$0xff]
        %v956 = vld [vmem:[#allocation5] sm:$0xff]
        %v958 = vsel %vm891, %v949, 0
        %v961 = vsel %vm891, %v956, 0
        %963 = vmatpush.xpose.msra.mxu0 0.0
        %964 = vmatpush.xpose.msra.mxu0 0.0
        %965 = vmatpush.xpose.msra.mxu0 0.0
        %966 = vmatpush.xpose.msra.mxu0 0.0
        %967 = vmatpush.xpose.msra.mxu0 0.0
        %968 = vmatpush.xpose.msra.mxu0 0.0
        %969 = vmatpush.xpose.msra.mxu0 0.0
        %970 = vmatpush.xpose.msra.mxu0 0.0
        %971 = vmatpush.xpose.msra.mxu0 0.0
        %972 = vmatpush.xpose.msra.mxu0 0.0
        %973 = vmatpush.xpose.msra.mxu0 0.0
        %974 = vmatpush.xpose.msra.mxu0 0.0
        %975 = vmatpush.xpose.msra.mxu0 0.0
        %976 = vmatpush.xpose.msra.mxu0 0.0
        %977 = vmatpush.xpose.msra.mxu0 0.0
        %978 = vmatpush.xpose.msra.mxu0 %v961
        %979 = vmatmul.f32.gmra.mxu0 %v958
        %v980 = vpop.f32.mrf.mxu0
        %v981 = vadd.f32 0.0, %v980
        %982 = vdwg.mxu0
        %v984 = vsel %vm891, %v953, 0
        %986 = vmatpush.xpose.msra.mxu0 0.0
        %987 = vmatpush.xpose.msra.mxu0 0.0
        %988 = vmatpush.xpose.msra.mxu0 0.0
        %989 = vmatpush.xpose.msra.mxu0 0.0
        %990 = vmatpush.xpose.msra.mxu0 0.0
        %991 = vmatpush.xpose.msra.mxu0 0.0
        %992 = vmatpush.xpose.msra.mxu0 0.0
        %993 = vmatpush.xpose.msra.mxu0 0.0
        %994 = vmatpush.xpose.msra.mxu0 0.0
        %995 = vmatpush.xpose.msra.mxu0 0.0
        %996 = vmatpush.xpose.msra.mxu0 0.0
        %997 = vmatpush.xpose.msra.mxu0 0.0
        %998 = vmatpush.xpose.msra.mxu0 0.0
        %999 = vmatpush.xpose.msra.mxu0 0.0
        %1000 = vmatpush.xpose.msra.mxu0 0.0
        %1001 = vmatpush.xpose.msra.mxu0 %v961
        %1002 = vmatmul.f32.gmra.mxu0 %v984
        %v1003 = vpop.f32.mrf.mxu0
        %v1004 = vadd.f32 0.0, %v1003
        %1005 = vdwg.mxu0
        %v1006 = vperm.slane %v954, 0
        %v1007 = vmul.f32 %v1006, %v942
        %v1008 = vmul.f32 %v1007, 1.442695
        %v1009 = vpow.pop %v1008
        %v1010 = vmul.f32 %v1009, 0.0
        %1012 = vset.pattern.permute.xlu0 0
        %1013 = vperm.xlu0 %1012, %v981
        %v1014 = vpop.permute.xlu0 %1013
        %v1016 = vperm.slane %v955, 0
        %v1017 = vmul.f32 %v1014, %v1016
        %v1018 = vadd.f32 %v1010, %v1017
        %1020 = vset.pattern.permute.xlu0 0
        %1021 = vperm.xlu0 %1020, %v1004
        %v1022 = vpop.permute.xlu0 %1021
        %v1024 = vmul.f32 %v1018, %v1022
        %v1025 = vsel %vm891, %v1024, 0.0
        %v1026 = vrot.slane %v1025, 4
        %v1027 = vadd.f32 %v1025, %v1026
        %v1028 = vrot.slane %v1027, 2
        %v1029 = vadd.f32 %v1027, %v1028
        %v1030 = vrot.slane %v1029, 1
        %v1031 = vadd.f32 %v1029, %v1030
        %v1032 = vperm.slane %v954, 1
        %v1033 = vmul.f32 %v1032, %v942
        %v1034 = vmul.f32 %v1033, 1.442695
        %v1035 = vpow.pop %v1034
        %v1036 = vmul.f32 %v1035, %v1018
        %1037 = vset.pattern.permute.xlu0 1
        %1038 = vperm.xlu0 %1037, %v981
        %v1039 = vpop.permute.xlu0 %1038
        %v1041 = vperm.slane %v955, 1
        %v1042 = vmul.f32 %v1039, %v1041
        %v1043 = vadd.f32 %v1036, %v1042
        %1044 = vset.pattern.permute.xlu0 1
        %1045 = vperm.xlu0 %1044, %v1004
        %v1046 = vpop.permute.xlu0 %1045
        %v1048 = vmul.f32 %v1043, %v1046
        %v1049 = vsel %vm891, %v1048, 0.0
        %v1050 = vrot.slane %v1049, 4
        %v1051 = vadd.f32 %v1049, %v1050
        %v1052 = vrot.slane %v1051, 2
        %v1053 = vadd.f32 %v1051, %v1052
        %v1054 = vrot.slane %v1053, 1
        %v1055 = vadd.f32 %v1053, %v1054
        %v1056 = vperm.slane %v954, 2
        %v1057 = vmul.f32 %v1056, %v942
        %v1058 = vmul.f32 %v1057, 1.442695
        %v1059 = vpow.pop %v1058
        %v1060 = vmul.f32 %v1059, %v1043
        %1061 = vset.pattern.permute.xlu0 2
        %1062 = vperm.xlu0 %1061, %v981
        %v1063 = vpop.permute.xlu0 %1062
        %v1065 = vperm.slane %v955, 2
        %v1066 = vmul.f32 %v1063, %v1065
        %v1067 = vadd.f32 %v1060, %v1066
        %1068 = vset.pattern.permute.xlu0 2
        %1069 = vperm.xlu0 %1068, %v1004
        %v1070 = vpop.permute.xlu0 %1069
        %v1072 = vmul.f32 %v1067, %v1070
        %v1073 = vsel %vm891, %v1072, 0.0
        %v1074 = vrot.slane %v1073, 4
        %v1075 = vadd.f32 %v1073, %v1074
        %v1076 = vrot.slane %v1075, 2
        %v1077 = vadd.f32 %v1075, %v1076
        %v1078 = vrot.slane %v1077, 1
        %v1079 = vadd.f32 %v1077, %v1078
        %v1080 = vperm.slane %v954, 3
        %v1081 = vmul.f32 %v1080, %v942
        %v1082 = vmul.f32 %v1081, 1.442695
        %v1083 = vpow.pop %v1082
        %v1084 = vmul.f32 %v1083, %v1067
        %1085 = vset.pattern.permute.xlu0 3
        %1086 = vperm.xlu0 %1085, %v981
        %v1087 = vpop.permute.xlu0 %1086
        %v1089 = vperm.slane %v955, 3
        %v1090 = vmul.f32 %v1087, %v1089
        %v1091 = vadd.f32 %v1084, %v1090
        %1092 = vset.pattern.permute.xlu0 3
        %1093 = vperm.xlu0 %1092, %v1004
        %v1094 = vpop.permute.xlu0 %1093
        %v1096 = vmul.f32 %v1091, %v1094
        %v1097 = vsel %vm891, %v1096, 0.0
        %v1098 = vrot.slane %v1097, 4
        %v1099 = vadd.f32 %v1097, %v1098
        %v1100 = vrot.slane %v1099, 2
        %v1101 = vadd.f32 %v1099, %v1100
        %v1102 = vrot.slane %v1101, 1
        %v1103 = vadd.f32 %v1101, %v1102
        %v1104 = vperm.slane %v954, 4
        %v1105 = vmul.f32 %v1104, %v942
        %v1106 = vmul.f32 %v1105, 1.442695
        %v1107 = vpow.pop %v1106
        %v1108 = vmul.f32 %v1107, %v1091
        %1109 = vset.pattern.permute.xlu0 4
        %1110 = vperm.xlu0 %1109, %v981
        %v1111 = vpop.permute.xlu0 %1110
        %v1113 = vperm.slane %v955, 4
        %v1114 = vmul.f32 %v1111, %v1113
        %v1115 = vadd.f32 %v1108, %v1114
        %1116 = vset.pattern.permute.xlu0 4
        %1117 = vperm.xlu0 %1116, %v1004
        %v1118 = vpop.permute.xlu0 %1117
        %v1120 = vmul.f32 %v1115, %v1118
        %v1121 = vsel %vm891, %v1120, 0.0
        %v1122 = vrot.slane %v1121, 4
        %v1123 = vadd.f32 %v1121, %v1122
        %v1124 = vrot.slane %v1123, 2
        %v1125 = vadd.f32 %v1123, %v1124
        %v1126 = vrot.slane %v1125, 1
        %v1127 = vadd.f32 %v1125, %v1126
        %v1128 = vperm.slane %v954, 5
        %v1129 = vmul.f32 %v1128, %v942
        %v1130 = vmul.f32 %v1129, 1.442695
        %v1131 = vpow.pop %v1130
        %v1132 = vmul.f32 %v1131, %v1115
        %1133 = vset.pattern.permute.xlu0 5
        %1134 = vperm.xlu0 %1133, %v981
        %v1135 = vpop.permute.xlu0 %1134
        %v1137 = vperm.slane %v955, 5
        %v1138 = vmul.f32 %v1135, %v1137
        %v1139 = vadd.f32 %v1132, %v1138
        %1140 = vset.pattern.permute.xlu0 5
        %1141 = vperm.xlu0 %1140, %v1004
        %v1142 = vpop.permute.xlu0 %1141
        %v1144 = vmul.f32 %v1139, %v1142
        %v1145 = vsel %vm891, %v1144, 0.0
        %v1146 = vrot.slane %v1145, 4
        %v1147 = vadd.f32 %v1145, %v1146
        %v1148 = vrot.slane %v1147, 2
        %v1149 = vadd.f32 %v1147, %v1148
        %v1150 = vrot.slane %v1149, 1
        %v1151 = vadd.f32 %v1149, %v1150
        %v1152 = vperm.slane %v954, 6
        %v1153 = vmul.f32 %v1152, %v942
        %v1154 = vmul.f32 %v1153, 1.442695
        %v1155 = vpow.pop %v1154
        %v1156 = vmul.f32 %v1155, %v1139
        %1157 = vset.pattern.permute.xlu0 6
        %1158 = vperm.xlu0 %1157, %v981
        %v1159 = vpop.permute.xlu0 %1158
        %v1161 = vperm.slane %v955, 6
        %v1162 = vmul.f32 %v1159, %v1161
        %v1163 = vadd.f32 %v1156, %v1162
        %1164 = vset.pattern.permute.xlu0 6
        %1165 = vperm.xlu0 %1164, %v1004
        %v1166 = vpop.permute.xlu0 %1165
        %v1168 = vmul.f32 %v1163, %v1166
        %v1169 = vsel %vm891, %v1168, 0.0
        %v1170 = vrot.slane %v1169, 4
        %v1171 = vadd.f32 %v1169, %v1170
        %v1172 = vrot.slane %v1171, 2
        %v1173 = vadd.f32 %v1171, %v1172
        %v1174 = vrot.slane %v1173, 1
        %v1175 = vadd.f32 %v1173, %v1174
        %v1176 = vperm.slane %v954, 7
        %v1177 = vmul.f32 %v1176, %v942
        %v1178 = vmul.f32 %v1177, 1.442695
        %v1179 = vpow.pop %v1178
        %v1180 = vmul.f32 %v1179, %v1163
        %1181 = vset.pattern.permute.xlu0 7
        %1182 = vperm.xlu0 %1181, %v981
        %v1183 = vpop.permute.xlu0 %1182
        %v1185 = vperm.slane %v955, 7
        %v1186 = vmul.f32 %v1183, %v1185
        %v1187 = vadd.f32 %v1180, %v1186
        %1188 = vset.pattern.permute.xlu0 7
        %1189 = vperm.xlu0 %1188, %v1004
        %v1190 = vpop.permute.xlu0 %1189
        %v1192 = vmul.f32 %v1187, %v1190
        %v1193 = vsel %vm891, %v1192, 0.0
        %v1194 = vrot.slane %v1193, 4
        %v1195 = vadd.f32 %v1193, %v1194
        %v1196 = vrot.slane %v1195, 2
        %v1197 = vadd.f32 %v1195, %v1196
        %v1198 = vrot.slane %v1197, 1
        %v1199 = vadd.f32 %v1197, %v1198
        %v1200 = vsel %vm841, %v1031, %v1055
        %v1201 = vsel %vm848, %v1200, %v1079
        %vm1202 = vcmask 1042432
        %v1203 = vsel %vm1202, %v1201, %v1103
        %v1204 = vsel %vm801, %v1203, %v1127
        %vm1205 = vcmask 1044480
        %v1206 = vsel %vm1205, %v1204, %v1151
        %vm1207 = vcmask 1045504
        %v1208 = vsel %vm1207, %v1206, %v1175
        %vm1209 = vcmask 1046528
        %v1210 = vsel %vm1209, %v1208, %v1199
        %1211 = vst.msk [vmem:[#allocation6] sm:$0xff] %vm891, %v1210
        %v1212 = vld [vmem:[#allocation6] sm:$0xff]
        %v1213 = vld [vmem:[%s737] sm:$0x1]
        %v1215 = vperm.slane %v1213, 0
        %v1217 = vmul.f32 %v877, %v1215
        %v1218 = vadd.f32 %v1212, %v1217
        %v1219 = vsub.f32 0.0, %v832
        %v1220 = vmul.f32 %v1219, 1.442695
        %v1221 = vpow.pop %v1220
        %v1222 = vadd.f32 %v1221, 1.0
        %v1223 = vrcp.pop %v1222
        %v1224 = vmul.f32 %v1222, %v1223
        %v1225 = vsub.f32 1.0, %v1224
        %v1226 = vmul.f32 %v1223, %v1225
        %v1227 = vadd.f32 %v1223, %v1226
        %vm1228 = vweird.f32 %v1222
        %vm1229 = vweird.f32 %v1223
        %vm1230 = vmor %vm1228, %vm1229
        %v1231 = vsel %vm1230, %v1223, %v1227
        %v1232 = vand.u32 2147483647, %v1222
        %vm1233 = vcmp.eq.f32.partialorder %v1232, 8.507059e+37
        %v1234 = vand.u32 %v1222, 2147483648
        %v1235 = vor.u32 1.1754944e-38, %v1234
        %v1236 = vsel %vm1233, %v1235, %v1231
        %v1237 = vmul.f32 1.0, %v1236
        %v1238 = vmul.f32 %v832, %v1237
        %v1239 = vmul.f32 %v1218, %v1238
        %v1240 = vpack.c.bf16 %v1239, %v1239
        %v1241 = vld [vmem:[%s742] sm:$0xf]
        %v1242 = vld [vmem:[%s742 + $0x4] sm:$0xf]
        %v1245 = vunpack.c.l.b16 %v1241
        %v1246 = vunpack.c.l.b16 %v1242
        %v1247 = vpack.c.b16 %v1246, %v1245
        %v1250 = vsel %vm891, %v1240, 0
        %1252 = vmatpush.bf16.msra.mxu0 0
        %1253 = vmatpush.bf16.msra.mxu0 0
        %1254 = vmatpush.bf16.msra.mxu0 0
        %1255 = vmatpush.bf16.msra.mxu0 0
        %1256 = vmatpush.bf16.msra.mxu0 0
        %1257 = vmatpush.bf16.msra.mxu0 0
        %1258 = vmatpush.bf16.msra.mxu0 0
        %1259 = vmatpush.bf16.msra.mxu0 %v1247
        %1260 = vmatmul.bf16.gmra.mxu0 %v1250
        %v1261 = vpop.f32.mrf.mxu0
        %v1262 = vadd.f32 0.0, %v1261
        %v1263 = vpop.f32.mrf.mxu0
        %1264 = vdwg.mxu0
        %v1265 = vadd.f32 %v755, %v1262
        %1266 = vst.msk [vmem:[#allocation2] sm:$0xff] %vm758, %v1265
        %p1267 = scmp.eq.s32.totalorder %s38, 1
        // Predicated region
        $region97: #{conv_block_forward.3} parent=71 // pred_check
          %p1268 = pneg %p1267
        $region98: #{conv_block_forward.3} parent=71 // pred_check_branch
          %1270 = sbr.rel (%p1268) target = $region100
        $region99: #{conv_block_forward.3} parent=71 // pred_region
          %1271 = vst.msk [vmem:[%s746] sm:$0xff] %vm758, %v1265
        $region100: #{conv_block_forward.3} parent=71 // pred_fallthru
          _
        %p1272 = scmp.lt.s32.totalorder %s37, 1
        %s1273 = scalar_select %p1272, %s37, 1
        %s1274 = smul.addr %s1273, 8
        %s1275 = scalar_lea.vmem %s13, %s1274
        // Predicated region
        $region101: #{conv_block_forward.3} parent=71 // pred_check
          %p1276 = pneg %p401
        $region102: #{conv_block_forward.3} parent=71 // pred_check_branch
          %1278 = sbr.rel (%p1276) target = $region104
        $region103: #{conv_block_forward.3} parent=71 // pred_region
          _
        $region104: #{conv_block_forward.3} parent=71 // pred_fallthru
          _
      $region72: #{conv_block_forward.3} parent=5 // pred_fallthru
        _
      %p1279 = scmp.le.s32.totalorder 2, %s28
      // Predicated region
      $region105: #{conv_block_forward.3} parent=5 // pred_check
        %p1280 = pneg %p1279
      $region106: #{conv_block_forward.3} parent=5 // pred_check_branch
        %1282 = sbr.rel (%p1280) target = $region108
      $region107: #{conv_block_forward.3} parent=5 // pred_region
        %s1283 = ssub.s32 %s28, 2
        // Predicated region
        $region109: #{conv_block_forward.3} parent=107 // pred_check
          %p1284 = pneg %p407
        $region110: #{conv_block_forward.3} parent=107 // pred_check_branch
          %1286 = sbr.rel (%p1284) target = $region112
        $region111: #{conv_block_forward.3} parent=107 // pred_region
          %p1287 = scmp.lt.s32.totalorder %s39, 1
          %s1288 = scalar_select %p1287, %s39, 1
          %s1289 = smul.addr %s1288, 8
          %s1290 = scalar_lea.vmem %s13, %s1289
        $region112: #{conv_block_forward.3} parent=107 // pred_fallthru
          _
      $region108: #{conv_block_forward.3} parent=5 // pred_fallthru
        _
    $region6: #{conv_block_forward.3} parent=1 // loop_footer
      %s32 = sadd.s32 1, %s28
    $region7: #{conv_block_forward.3} parent=1 // loop_footer_branch
      %27 = sbr.rel target = $region3
    $region8: #{conv_block_forward.3} parent=1 // loop_exit
      _
    %1291 = vsyncpa [#allocation8], 1
    %s1292 = scalar_lea.sflag [#allocation8], 1
    %1293 = vsyncpa %s1292, 1
    %1294 = vsyncpa [#allocation10], 1
    %s1295 = scalar_lea.sflag [#allocation10], 1
    %1296 = vsyncpa %s1295, 1
    %1297 = vsyncpa [#allocation13], 1
    %s1298 = scalar_lea.sflag [#allocation13], 1
    %1299 = vsyncpa %s1298, 1

</llo_original>
